<compile_context>
chip_gen: v7x
topology: tpu7x:2x2x1
jax: 0.10.0
libtpu: 0.0.40
codegen_flags: <defaults>
</compile_context>

<pallas_src>
import functools

import jax
import jax.numpy as jnp
from jax import lax
from jax.experimental import pallas as pl
from jax.experimental.pallas import tpu as pltpu

_NEG_BIG = -1e30  # bias for padded expert rows -> exp() underflows to exactly 0


def _round_up(x, m):
    return ((x + m - 1) // m) * m


def _router_kernel(x_ref, w1_ref, b1_ref, w2_ref, b2_ref, w3_ref, b3_ref,
                   out_ref, *, input_dim, use_bf16_matmul):
    """One token-tile of the router MLP + softmax, feature-major layout.

    Shapes (tb = token tile, Ep = num_experts rounded up to a multiple of 8):
      x_ref  : (input_dim, tb)
      w1_ref : (64, input_dim)   b1_ref : (64, 1)
      w2_ref : (32, 64)          b2_ref : (32, 1)
      w3_ref : (Ep, 32)          b3_ref : (Ep, 1)   (rows >= E: w = 0, b = -1e30)
      out_ref: (2*Ep, tb)  rows [0, Ep) = logits, rows [Ep, 2Ep) = softmax weights
    """

    def mxu_dot(a, b):
        if use_bf16_matmul:
            # Single-pass bf16 MXU matmul with f32 accumulation.
            return jnp.dot(a.astype(jnp.bfloat16), b.astype(jnp.bfloat16),
                           preferred_element_type=jnp.float32)
        # Pin full-f32 (multi-pass) so behaviour is deterministic across chips.
        return jnp.dot(a, b, preferred_element_type=jnp.float32,
                       precision=lax.Precision.HIGHEST)

    x = x_ref[...]                                            # (input_dim, tb) f32

    # Layer 1: Linear(input_dim, 64) + ReLU.
    if input_dim == 1:
        # VPU broadcast outer-product (64,1)*(1,tb) -> (64,tb); avoids pushing a
        # degenerate K=1 matmul through the MXU.
        h1 = w1_ref[...] * x
    else:
        h1 = mxu_dot(w1_ref[...], x)
    h1 = jnp.maximum(h1 + b1_ref[...], 0.0)                   # (64, tb) f32

    # Layer 2: Linear(64, 32) + ReLU (MXU matmul, N = tb lanes).
    h2 = jnp.maximum(mxu_dot(w2_ref[...], h1) + b2_ref[...], 0.0)   # (32, tb)

    # Layer 3: Linear(32, E) -> routing logits (padded expert rows land at -1e30).
    logits = mxu_dot(w3_ref[...], h2) + b3_ref[...]           # (Ep, tb)

    # Numerically stable softmax over the expert (sublane) axis.  Exact division
    # so the weights sum to 1 to f32 precision (the approximate EUP reciprocal
    # is NOT accurate enough for that invariant).
    m = jnp.max(logits, axis=0, keepdims=True)                # (1, tb)
    e = jnp.exp(logits - m)                                   # padded rows -> 0
    weights = e / jnp.sum(e, axis=0, keepdims=True)           # (Ep, tb)

    # Single lane-dense, sublane-aligned full-tile store (logits over weights).
    out_ref[...] = jnp.concatenate([logits, weights], axis=0).astype(out_ref.dtype)


@functools.partial(
    jax.jit,
    static_argnames=("num_experts", "block_tokens", "use_bf16_matmul",
                     "feature_major_output"))
def moe_router_forward(timestamp_input, params, auxiliary_features=None, *,
                       num_experts=4, block_tokens=4096,
                       use_bf16_matmul=True, feature_major_output=False):
    """Pallas MoERouter forward (eval mode).

    Args:
      timestamp_input: (batch,) or (batch, 1) timestamps (higher ranks squeezed).
      params: dict in PyTorch nn.Linear layout:
        w1 (64, input_dim), b1 (64,) or (64, 1), w2 (32, 64), b2 (32,) or (32, 1),
        w3 (num_experts, 32), b3 (num_experts,) or (num_experts, 1).
      auxiliary_features: optional (batch, aux_dim) features concatenated onto the
        timestamp column (mirrors config.use_aux_features_router).
      num_experts: number of experts E.
      block_tokens: max token tile (2048 recommended for v5e, up to 8192 v6e/v7x).
      use_bf16_matmul: feed the MXU bf16 operands (f32 accumulation).  Set False
        for a pinned full-f32 (Precision.HIGHEST) path.
      feature_major_output: if True, return (E, batch) slabs (no output transpose).

    Returns:
      (logits, weights); (batch, E) each by default, (E, batch) if feature-major.
    """
    x = timestamp_input
    # Match the PyTorch shape handling.
    if x.ndim > 2:
        x = jnp.squeeze(x)
    if x.ndim == 1:
        x = x[:, None]
    x = x.astype(jnp.float32)
    if auxiliary_features is not None:
        aux = auxiliary_features
        if aux.ndim == 1:
            aux = aux[:, None]
        elif aux.ndim > 2:
            aux = aux.reshape(aux.shape[0], -1)
        x = jnp.concatenate([x, aux.astype(jnp.float32)], axis=1)

    batch, input_dim = x.shape
    E = num_experts
    Ep = max(_round_up(E, 8), 8)            # sublane-aligned expert rows

    # --- token tiling --------------------------------------------------------
    # Lane axis = tokens.  Pad only to a 256 multiple (MXU N width on v6e/v7x),
    # derive the tile from the batch so padding waste stays small, and keep
    # >= 2 grid steps for large batches so both v7x TensorCores get work under
    # dimension_semantics=("parallel",).
    padded0 = _round_up(batch, 256)
    min_steps = 2 if padded0 >= 512 else 1
    n_steps = max(min_steps, pl.cdiv(padded0, block_tokens))
    tb = _round_up(pl.cdiv(padded0, n_steps), 256)
    padded = n_steps * tb

    # --- feature-major input slab (no materialized zeros + scatter) ----------
    if input_dim == 1:
        x_fm = x.reshape(1, batch)          # (batch,1) -> (1,batch): free reshape
    else:
        # TODO(synk): for input_dim > 1 the transpose could move in-kernel
        # (token-major block + small in-kernel transpose) to save this XLA op.
        x_fm = x.T
    if padded != batch:
        x_fm = jnp.pad(x_fm, ((0, 0), (0, padded - batch)))

    # --- parameters (PyTorch layout), expert rows padded to Ep ---------------
    w1 = params["w1"].astype(jnp.float32)
    b1 = params["b1"].astype(jnp.float32).reshape(-1, 1)
    w2 = params["w2"].astype(jnp.float32)
    b2 = params["b2"].astype(jnp.float32).reshape(-1, 1)
    w3 = params["w3"].astype(jnp.float32)
    b3 = params["b3"].astype(jnp.float32).reshape(-1, 1)
    w3p = jnp.pad(w3, ((0, Ep - E), (0, 0)))                     # zero weights
    b3p = jnp.pad(b3, ((0, Ep - E), (0, 0)), constant_values=_NEG_BIG)

    kernel = functools.partial(_router_kernel, input_dim=input_dim,
                               use_bf16_matmul=use_bf16_matmul)

    out = pl.pallas_call(
        kernel,
        out_shape=jax.ShapeDtypeStruct((2 * Ep, padded), jnp.float32),
        grid=(n_steps,),
        in_specs=[
            # token-tiled, feature-major input
            pl.BlockSpec((input_dim, tb), lambda i: (0, i)),
            # router parameters: constant block index -> DMA'd once, VMEM-resident
            pl.BlockSpec(w1.shape, lambda i: (0, 0)),
            pl.BlockSpec(b1.shape, lambda i: (0, 0)),
            pl.BlockSpec(w2.shape, lambda i: (0, 0)),
            pl.BlockSpec(b2.shape, lambda i: (0, 0)),
            pl.BlockSpec(w3p.shape, lambda i: (0, 0)),
            pl.BlockSpec(b3p.shape, lambda i: (0, 0)),
        ],
        out_specs=pl.BlockSpec((2 * Ep, tb), lambda i: (0, i)),
        compiler_params=pltpu.CompilerParams(
            dimension_semantics=("parallel",)),
    )(x_fm, w1, b1, w2, b2, w3p, b3p)

    if feature_major_output:
        # (E, batch) slabs — cheapest if downstream top-k/dispatch consumes them.
        return out[:E, :batch], out[Ep:Ep + E, :batch]
    # Single transpose of the packed slab, then cheap column slices.
    packed = out[:, :batch].T                                   # (batch, 2*Ep)
    return packed[:, :E], packed[:, Ep:Ep + E]


def init_router_params(key, input_dim, num_experts=4):
    """nn.Linear-style init, stored in PyTorch (out_features, in_features) layout."""
    dims = [(input_dim, 64), (64, 32), (32, num_experts)]
    params = {}
    for i, (fan_in, fan_out) in enumerate(dims, start=1):
        key, kw, kb = jax.random.split(key, 3)
        bound = 1.0 / jnp.sqrt(jnp.float32(fan_in))
        params[f"w{i}"] = jax.random.uniform(
            kw, (fan_out, fan_in), jnp.float32, -bound, bound)
        params[f"b{i}"] = jax.random.uniform(
            kb, (fan_out, 1), jnp.float32, -bound, bound)
    return params


def _reference_forward(x, params):
    """Plain-JAX reference (token-major, pinned f32 precision)."""
    if x.ndim == 1:
        x = x[:, None]
    x = x.astype(jnp.float32)
    hi = lax.Precision.HIGHEST
    h1 = jnp.maximum(
        jnp.dot(x, params["w1"].T, precision=hi) + params["b1"].reshape(1, -1), 0.0)
    h2 = jnp.maximum(
        jnp.dot(h1, params["w2"].T, precision=hi) + params["b2"].reshape(1, -1), 0.0)
    logits = jnp.dot(h2, params["w3"].T, precision=hi) + params["b3"].reshape(1, -1)
    weights = jax.nn.softmax(logits, axis=-1)
    return logits, weights


if __name__ == "__main__":
    key = jax.random.PRNGKey(0)
    key, k_in = jax.random.split(key)

    input_dim = 1
    num_experts = 4
    batch = 8

    # timestamps: (batch,) — the module also accepts (batch, 1)
    timestamps = jax.random.uniform(k_in, (batch,), jnp.float32, 0.0, 2.0)
    params = init_router_params(key, input_dim, num_experts)

    ref_logits, ref_weights = _reference_forward(timestamps, params)

    # 1) Exact-precision path (pinned HIGHEST f32 matmuls): tight tolerance.
    logits32, weights32 = moe_router_forward(
        timestamps, params, num_experts=num_experts, use_bf16_matmul=False)
    jax.block_until_ready((logits32, weights32))
    assert logits32.shape == (batch, num_experts)
    assert weights32.shape == (batch, num_experts)
    assert jnp.allclose(logits32, ref_logits, atol=1e-3, rtol=1e-3)
    assert jnp.allclose(weights32, ref_weights, atol=1e-3, rtol=1e-3)
    assert jnp.allclose(jnp.sum(weights32, axis=-1), 1.0, atol=1e-5)

    # 2) Default fast path (single-pass bf16 MXU matmuls, f32 accumulation):
    #    relaxed tolerance vs the f32 reference; normalization is still exact.
    logits_bf, weights_bf = moe_router_forward(
        timestamps, params, num_experts=num_experts)
    jax.block_until_ready((logits_bf, weights_bf))
    assert logits_bf.shape == (batch, num_experts)
    assert weights_bf.shape == (batch, num_experts)
    assert jnp.allclose(logits_bf, ref_logits, atol=1e-1, rtol=5e-2)
    assert jnp.allclose(weights_bf, ref_weights, atol=5e-2, rtol=5e-2)
    assert jnp.allclose(jnp.sum(weights_bf, axis=-1), 1.0, atol=1e-5)

    print("KERNEL_OK")
</pallas_src>

<mosaic_0001>
module attributes {stable_mosaic.version = 11 : i64} {
  func.func @_router_kernel(%arg0: i32, %arg1: memref<1x256xf32, #tpu.memory_space<vmem>>, %arg2: memref<64x1xf32, #tpu.memory_space<vmem>>, %arg3: memref<64x1xf32, #tpu.memory_space<vmem>>, %arg4: memref<32x64xf32, #tpu.memory_space<vmem>>, %arg5: memref<32x1xf32, #tpu.memory_space<vmem>>, %arg6: memref<8x32xf32, #tpu.memory_space<vmem>>, %arg7: memref<8x1xf32, #tpu.memory_space<vmem>>, %arg8: memref<16x256xf32, #tpu.memory_space<vmem>>) attributes {dimension_semantics = [#tpu.dimension_semantics<parallel>], iteration_bounds = array<i64: 1>, scalar_prefetch = 0 : i64, scratch_operands = 0 : i64, tpu.core_type = #tpu.core_type<tc>, window_params = [{transform_indices = @transform_0, window_bounds = array<i64: 1, 256>}, {pipeline_mode = #tpu.pipeline_mode<synchronous>, transform_indices = @transform_1, window_bounds = array<i64: 64, 1>}, {pipeline_mode = #tpu.pipeline_mode<synchronous>, transform_indices = @transform_2, window_bounds = array<i64: 64, 1>}, {pipeline_mode = #tpu.pipeline_mode<synchronous>, transform_indices = @transform_3, window_bounds = array<i64: 32, 64>}, {pipeline_mode = #tpu.pipeline_mode<synchronous>, transform_indices = @transform_4, window_bounds = array<i64: 32, 1>}, {pipeline_mode = #tpu.pipeline_mode<synchronous>, transform_indices = @transform_5, window_bounds = array<i64: 8, 32>}, {pipeline_mode = #tpu.pipeline_mode<synchronous>, transform_indices = @transform_6, window_bounds = array<i64: 8, 1>}, {transform_indices = @transform_7, window_bounds = array<i64: 16, 256>}]} {
    %c0 = arith.constant 0 : index
    %c0_0 = arith.constant 0 : index
    %0 = vector.load %arg1[%c0, %c0_0] : memref<1x256xf32, #tpu.memory_space<vmem>>, vector<1x256xf32>
    %c0_1 = arith.constant 0 : index
    %c0_2 = arith.constant 0 : index
    %1 = vector.load %arg2[%c0_1, %c0_2] : memref<64x1xf32, #tpu.memory_space<vmem>>, vector<64x1xf32>
    %2 = vector.broadcast %1 : vector<64x1xf32> to vector<64x256xf32>
    %3 = vector.broadcast %0 : vector<1x256xf32> to vector<64x256xf32>
    %4 = arith.mulf %2, %3 : vector<64x256xf32>
    %c0_3 = arith.constant 0 : index
    %c0_4 = arith.constant 0 : index
    %5 = vector.load %arg3[%c0_3, %c0_4] : memref<64x1xf32, #tpu.memory_space<vmem>>, vector<64x1xf32>
    %6 = vector.broadcast %5 : vector<64x1xf32> to vector<64x256xf32>
    %7 = arith.addf %4, %6 : vector<64x256xf32>
    %cst = arith.constant 0.000000e+00 : f32
    %8 = vector.broadcast %cst : f32 to vector<64x256xf32>
    %9 = arith.maximumf %7, %8 : vector<64x256xf32>
    %c0_5 = arith.constant 0 : index
    %c0_6 = arith.constant 0 : index
    %10 = vector.load %arg4[%c0_5, %c0_6] : memref<32x64xf32, #tpu.memory_space<vmem>>, vector<32x64xf32>
    %cst_7 = arith.constant dense<0.000000e+00> : vector<32x256xf32>
    %11 = tpu.matmul %10, %9, %cst_7 {dimension_numbers = #tpu.dot_dimension_numbers<[1], [0], [0], [1], [0, 0, 1, 1], [], []>, precision = #tpu.contract_precision<fp32>} : vector<32x64xf32>, vector<64x256xf32>, vector<32x256xf32> -> vector<32x256xf32>
    %c0_8 = arith.constant 0 : index
    %c0_9 = arith.constant 0 : index
    %12 = vector.load %arg5[%c0_8, %c0_9] : memref<32x1xf32, #tpu.memory_space<vmem>>, vector<32x1xf32>
    %13 = vector.broadcast %12 : vector<32x1xf32> to vector<32x256xf32>
    %14 = arith.addf %11, %13 : vector<32x256xf32>
    %cst_10 = arith.constant 0.000000e+00 : f32
    %15 = vector.broadcast %cst_10 : f32 to vector<32x256xf32>
    %16 = arith.maximumf %14, %15 : vector<32x256xf32>
    %c0_11 = arith.constant 0 : index
    %c0_12 = arith.constant 0 : index
    %17 = vector.load %arg6[%c0_11, %c0_12] : memref<8x32xf32, #tpu.memory_space<vmem>>, vector<8x32xf32>
    %cst_13 = arith.constant dense<0.000000e+00> : vector<8x256xf32>
    %18 = tpu.matmul %17, %16, %cst_13 {dimension_numbers = #tpu.dot_dimension_numbers<[1], [0], [0], [1], [0, 0, 1, 1], [], []>, precision = #tpu.contract_precision<fp32>} : vector<8x32xf32>, vector<32x256xf32>, vector<8x256xf32> -> vector<8x256xf32>
    %c0_14 = arith.constant 0 : index
    %c0_15 = arith.constant 0 : index
    %19 = vector.load %arg7[%c0_14, %c0_15] : memref<8x1xf32, #tpu.memory_space<vmem>>, vector<8x1xf32>
    %20 = vector.broadcast %19 : vector<8x1xf32> to vector<8x256xf32>
    %21 = arith.addf %18, %20 : vector<8x256xf32>
    %cst_16 = arith.constant dense<0xFF800000> : vector<256xf32>
    %22 = vector.multi_reduction <maximumf>, %21, %cst_16 [0] : vector<8x256xf32> to vector<256xf32>
    %23 = vector.shape_cast %22 : vector<256xf32> to vector<1x256xf32>
    %24 = vector.broadcast %23 : vector<1x256xf32> to vector<8x256xf32>
    %25 = arith.subf %21, %24 : vector<8x256xf32>
    %26 = math.exp %25 : vector<8x256xf32>
    %cst_17 = arith.constant dense<0.000000e+00> : vector<256xf32>
    %27 = vector.multi_reduction <add>, %26, %cst_17 [0] : vector<8x256xf32> to vector<256xf32>
    %28 = vector.shape_cast %27 : vector<256xf32> to vector<1x256xf32>
    %29 = vector.broadcast %28 : vector<1x256xf32> to vector<8x256xf32>
    %30 = arith.divf %26, %29 : vector<8x256xf32>
    %31 = tpu.concatenate %21, %30 in 0 : vector<8x256xf32>, vector<8x256xf32> -> vector<16x256xf32>
    %c0_18 = arith.constant 0 : index
    %c0_19 = arith.constant 0 : index
    %32 = vector.load %arg8[%c0_18, %c0_19] : memref<16x256xf32, #tpu.memory_space<vmem>>, vector<16x256xf32>
    tpu.vector_store %arg8[%c0_18, %c0_19], %31 {strides = array<i32>} : memref<16x256xf32, #tpu.memory_space<vmem>>, vector<16x256xf32>,
    return
  }
  func.func @transform_0(%arg0: i32) -> (i32, i32) {
    %c0_i32 = arith.constant 0 : i32
    %c0_i32_0 = arith.constant 0 : i32
    return %c0_i32, %arg0 : i32, i32
  }
  func.func @transform_1(%arg0: i32) -> (i32, i32) {
    %c0_i32 = arith.constant 0 : i32
    %c0_i32_0 = arith.constant 0 : i32
    %c0_i32_1 = arith.constant 0 : i32
    return %c0_i32, %c0_i32_0 : i32, i32
  }
  func.func @transform_2(%arg0: i32) -> (i32, i32) {
    %c0_i32 = arith.constant 0 : i32
    %c0_i32_0 = arith.constant 0 : i32
    %c0_i32_1 = arith.constant 0 : i32
    return %c0_i32, %c0_i32_0 : i32, i32
  }
  func.func @transform_3(%arg0: i32) -> (i32, i32) {
    %c0_i32 = arith.constant 0 : i32
    %c0_i32_0 = arith.constant 0 : i32
    %c0_i32_1 = arith.constant 0 : i32
    return %c0_i32, %c0_i32_0 : i32, i32
  }
  func.func @transform_4(%arg0: i32) -> (i32, i32) {
    %c0_i32 = arith.constant 0 : i32
    %c0_i32_0 = arith.constant 0 : i32
    %c0_i32_1 = arith.constant 0 : i32
    return %c0_i32, %c0_i32_0 : i32, i32
  }
  func.func @transform_5(%arg0: i32) -> (i32, i32) {
    %c0_i32 = arith.constant 0 : i32
    %c0_i32_0 = arith.constant 0 : i32
    %c0_i32_1 = arith.constant 0 : i32
    return %c0_i32, %c0_i32_0 : i32, i32
  }
  func.func @transform_6(%arg0: i32) -> (i32, i32) {
    %c0_i32 = arith.constant 0 : i32
    %c0_i32_0 = arith.constant 0 : i32
    %c0_i32_1 = arith.constant 0 : i32
    return %c0_i32, %c0_i32_0 : i32, i32
  }
  func.func @transform_7(%arg0: i32) -> (i32, i32) {
    %c0_i32 = arith.constant 0 : i32
    %c0_i32_0 = arith.constant 0 : i32
    return %c0_i32, %arg0 : i32, i32
  }
}

</mosaic_0001>

<llo_original>
// kernel: moe_router_forward.1
$region0: #{moe_router_forward.1}
  #allocation0 [shape = 'u32[]', space=smem, size = 0x4, offset = 0x4, fixed_abs, tag = 'smem constant byte address 0x4 - core index']
  #allocation1 [shape = 'u32[144,128]{1,0:T(1,128)}', space=vmem, size = 0x12000, scoped, tag = 'internal scratch']
  %s0 = inlined_call_operand.vmem [shape: f32[1,256], index: 0, kind: input, shape index: {}]
  %s1 = inlined_call_operand.vmem [shape: f32[64,1], index: 1, kind: input, shape index: {}]
  %s2 = inlined_call_operand.vmem [shape: f32[64,1], index: 2, kind: input, shape index: {}]
  %s3 = inlined_call_operand.vmem [shape: f32[32,64], index: 3, kind: input, shape index: {}]
  %s4 = inlined_call_operand.vmem [shape: f32[32,1], index: 4, kind: input, shape index: {}]
  %s5 = inlined_call_operand.vmem [shape: f32[8,32], index: 5, kind: input, shape index: {}]
  %s6 = inlined_call_operand.vmem [shape: f32[8,1], index: 6, kind: input, shape index: {}]
  %s7 = inlined_call_operand.vmem [shape: f32[16,256], index: 7, kind: output, shape index: {}]
  %s8 = sld [smem:[#allocation0]]
  $region38: #{moe_router_forward.1} parent=0
    _
  %s10 = ssub.s32 1, %s8
  %s11 = scalar_select 0, %s10, %s8
  // Predicated region
  $region2: #{moe_router_forward.1} parent=0 // pred_check
    _
  $region3: #{moe_router_forward.1} parent=0 // pred_check_branch
    %13 = sbr.rel (0) target = $region5
  $region4: #{moe_router_forward.1} parent=0 // pred_region
    _
  $region5: #{moe_router_forward.1} parent=0 // pred_fallthru
    _
  // Predicated region
  $region6: #{moe_router_forward.1} parent=0 // pred_check
    _
  $region7: #{moe_router_forward.1} parent=0 // pred_check_branch
    %15 = sbr.rel (0) target = $region9
  $region8: #{moe_router_forward.1} parent=0 // pred_region
    _
  $region9: #{moe_router_forward.1} parent=0 // pred_fallthru
    _
  // Predicated region
  $region10: #{moe_router_forward.1} parent=0 // pred_check
    _
  $region11: #{moe_router_forward.1} parent=0 // pred_check_branch
    %17 = sbr.rel (0) target = $region13
  $region12: #{moe_router_forward.1} parent=0 // pred_region
    _
  $region13: #{moe_router_forward.1} parent=0 // pred_fallthru
    _
  // Predicated region
  $region14: #{moe_router_forward.1} parent=0 // pred_check
    _
  $region15: #{moe_router_forward.1} parent=0 // pred_check_branch
    %19 = sbr.rel (0) target = $region17
  $region16: #{moe_router_forward.1} parent=0 // pred_region
    _
  $region17: #{moe_router_forward.1} parent=0 // pred_fallthru
    _
  // Predicated region
  $region18: #{moe_router_forward.1} parent=0 // pred_check
    _
  $region19: #{moe_router_forward.1} parent=0 // pred_check_branch
    %21 = sbr.rel (0) target = $region21
  $region20: #{moe_router_forward.1} parent=0 // pred_region
    _
  $region21: #{moe_router_forward.1} parent=0 // pred_fallthru
    _
  // Predicated region
  $region22: #{moe_router_forward.1} parent=0 // pred_check
    _
  $region23: #{moe_router_forward.1} parent=0 // pred_check_branch
    %23 = sbr.rel (0) target = $region25
  $region24: #{moe_router_forward.1} parent=0 // pred_region
    _
  $region25: #{moe_router_forward.1} parent=0 // pred_fallthru
    _
  // Predicated region
  $region26: #{moe_router_forward.1} parent=0 // pred_check
    _
  $region27: #{moe_router_forward.1} parent=0 // pred_check_branch
    %25 = sbr.rel (0) target = $region29
  $region28: #{moe_router_forward.1} parent=0 // pred_region
    _
  $region29: #{moe_router_forward.1} parent=0 // pred_fallthru
    _
  %v26 = vld [vmem:[%s0] sm:$0x3]
  %v27 = vld [vmem:[%s1] sm:$0xff]
  %v28 = vld [vmem:[%s1 + $0x8] sm:$0xff]
  %v29 = vld [vmem:[%s1 + $0x10] sm:$0xff]
  %v30 = vld [vmem:[%s1 + $0x18] sm:$0xff]
  %v31 = vld [vmem:[%s1 + $0x20] sm:$0xff]
  %v32 = vld [vmem:[%s1 + $0x28] sm:$0xff]
  %v33 = vld [vmem:[%s1 + $0x30] sm:$0xff]
  %v34 = vld [vmem:[%s1 + $0x38] sm:$0xff]
  %36 = vset.pattern.permute.xlu0 0
  %37 = vperm.xlu0 %36, %v27
  %v38 = vpop.permute.xlu0 %37
  %41 = vset.pattern.permute.xlu0 0
  %42 = vperm.xlu0 %41, %v28
  %v43 = vpop.permute.xlu0 %42
  %46 = vset.pattern.permute.xlu0 0
  %47 = vperm.xlu0 %46, %v29
  %v48 = vpop.permute.xlu0 %47
  %51 = vset.pattern.permute.xlu0 0
  %52 = vperm.xlu0 %51, %v30
  %v53 = vpop.permute.xlu0 %52
  %56 = vset.pattern.permute.xlu0 0
  %57 = vperm.xlu0 %56, %v31
  %v58 = vpop.permute.xlu0 %57
  %61 = vset.pattern.permute.xlu0 0
  %62 = vperm.xlu0 %61, %v32
  %v63 = vpop.permute.xlu0 %62
  %66 = vset.pattern.permute.xlu0 0
  %67 = vperm.xlu0 %66, %v33
  %v68 = vpop.permute.xlu0 %67
  %71 = vset.pattern.permute.xlu0 0
  %72 = vperm.xlu0 %71, %v34
  %v73 = vpop.permute.xlu0 %72
  %v76 = vlaneseq
  %v77 = vshrl.u32 %v76, 7
  %v78 = vsub.s32 0, %v77
  %v79 = vrot.slane %v26, %v78
  %v80 = vlaneseq
  %v81 = vshrl.u32 %v80, 7
  %v82 = vsub.s32 1, %v81
  %v83 = vrot.slane %v26, %v82
  %v86 = vmul.f32 %v38, %v79
  %v87 = vmul.f32 %v38, %v83
  %v88 = vmul.f32 %v43, %v79
  %v89 = vmul.f32 %v43, %v83
  %v90 = vmul.f32 %v48, %v79
  %v91 = vmul.f32 %v48, %v83
  %v92 = vmul.f32 %v53, %v79
  %v93 = vmul.f32 %v53, %v83
  %v94 = vmul.f32 %v58, %v79
  %v95 = vmul.f32 %v58, %v83
  %v96 = vmul.f32 %v63, %v79
  %v97 = vmul.f32 %v63, %v83
  %v98 = vmul.f32 %v68, %v79
  %v99 = vmul.f32 %v68, %v83
  %v100 = vmul.f32 %v73, %v79
  %v101 = vmul.f32 %v73, %v83
  %v102 = vld [vmem:[%s2] sm:$0xff]
  %v103 = vld [vmem:[%s2 + $0x8] sm:$0xff]
  %v104 = vld [vmem:[%s2 + $0x10] sm:$0xff]
  %v105 = vld [vmem:[%s2 + $0x18] sm:$0xff]
  %v106 = vld [vmem:[%s2 + $0x20] sm:$0xff]
  %v107 = vld [vmem:[%s2 + $0x28] sm:$0xff]
  %v108 = vld [vmem:[%s2 + $0x30] sm:$0xff]
  %v109 = vld [vmem:[%s2 + $0x38] sm:$0xff]
  %111 = vset.pattern.permute.xlu0 0
  %112 = vperm.xlu0 %111, %v102
  %v113 = vpop.permute.xlu0 %112
  %116 = vset.pattern.permute.xlu0 0
  %117 = vperm.xlu0 %116, %v103
  %v118 = vpop.permute.xlu0 %117
  %121 = vset.pattern.permute.xlu0 0
  %122 = vperm.xlu0 %121, %v104
  %v123 = vpop.permute.xlu0 %122
  %126 = vset.pattern.permute.xlu0 0
  %127 = vperm.xlu0 %126, %v105
  %v128 = vpop.permute.xlu0 %127
  %131 = vset.pattern.permute.xlu0 0
  %132 = vperm.xlu0 %131, %v106
  %v133 = vpop.permute.xlu0 %132
  %136 = vset.pattern.permute.xlu0 0
  %137 = vperm.xlu0 %136, %v107
  %v138 = vpop.permute.xlu0 %137
  %141 = vset.pattern.permute.xlu0 0
  %142 = vperm.xlu0 %141, %v108
  %v143 = vpop.permute.xlu0 %142
  %146 = vset.pattern.permute.xlu0 0
  %147 = vperm.xlu0 %146, %v109
  %v148 = vpop.permute.xlu0 %147
  %v150 = vadd.f32 %v86, %v113
  %v151 = vadd.f32 %v87, %v113
  %v152 = vadd.f32 %v88, %v118
  %v153 = vadd.f32 %v89, %v118
  %v154 = vadd.f32 %v90, %v123
  %v155 = vadd.f32 %v91, %v123
  %v156 = vadd.f32 %v92, %v128
  %v157 = vadd.f32 %v93, %v128
  %v158 = vadd.f32 %v94, %v133
  %v159 = vadd.f32 %v95, %v133
  %v160 = vadd.f32 %v96, %v138
  %v161 = vadd.f32 %v97, %v138
  %v162 = vadd.f32 %v98, %v143
  %v163 = vadd.f32 %v99, %v143
  %v164 = vadd.f32 %v100, %v148
  %v165 = vadd.f32 %v101, %v148
  %v166 = vmax.f32 %v150, 0.0
  %v167 = vmax.f32 %v151, 0.0
  %v168 = vmax.f32 %v152, 0.0
  %v169 = vmax.f32 %v153, 0.0
  %v170 = vmax.f32 %v154, 0.0
  %v171 = vmax.f32 %v155, 0.0
  %v172 = vmax.f32 %v156, 0.0
  %v173 = vmax.f32 %v157, 0.0
  %v174 = vmax.f32 %v158, 0.0
  %v175 = vmax.f32 %v159, 0.0
  %v176 = vmax.f32 %v160, 0.0
  %v177 = vmax.f32 %v161, 0.0
  %v178 = vmax.f32 %v162, 0.0
  %v179 = vmax.f32 %v163, 0.0
  %v180 = vmax.f32 %v164, 0.0
  %v181 = vmax.f32 %v165, 0.0
  %v182 = vld [vmem:[%s3] sm:$0xff]
  %v183 = vld [vmem:[%s3 + $0x8] sm:$0xff]
  %v184 = vld [vmem:[%s3 + $0x10] sm:$0xff]
  %v185 = vld [vmem:[%s3 + $0x18] sm:$0xff]
  %v186 = vld [vmem:[%s4] sm:$0xff]
  %v187 = vld [vmem:[%s4 + $0x8] sm:$0xff]
  %v188 = vld [vmem:[%s4 + $0x10] sm:$0xff]
  %v189 = vld [vmem:[%s4 + $0x18] sm:$0xff]
  %191 = vset.pattern.permute.xlu0 0
  %192 = vperm.xlu0 %191, %v186
  %v193 = vpop.permute.xlu0 %192
  %196 = vset.pattern.permute.xlu0 0
  %197 = vperm.xlu0 %196, %v187
  %v198 = vpop.permute.xlu0 %197
  %201 = vset.pattern.permute.xlu0 0
  %202 = vperm.xlu0 %201, %v188
  %v203 = vpop.permute.xlu0 %202
  %206 = vset.pattern.permute.xlu0 0
  %207 = vperm.xlu0 %206, %v189
  %v208 = vpop.permute.xlu0 %207
  %vm210 = vcmask 523264
  %v212 = vsel %vm210, %v182, 0
  %v215 = vsel %vm210, %v183, 0
  %v218 = vsel %vm210, %v184, 0
  %v221 = vsel %vm210, %v185, 0
  %v223 = vand.u32 %v167, 4294901760
  %224 = vmatprep.subr.mxu0 %v223
  %v225 = vand.u32 %v166, 4294901760
  %226 = vmatpush1.msra.mxu0 %v225
  %v227 = vand.u32 %v169, 4294901760
  %228 = vmatprep.subr.mxu0 %v227
  %v229 = vand.u32 %v168, 4294901760
  %230 = vmatpush1.msra.mxu0 %v229
  %v231 = vand.u32 %v171, 4294901760
  %232 = vmatprep.subr.mxu0 %v231
  %v233 = vand.u32 %v170, 4294901760
  %234 = vmatpush1.msra.mxu0 %v233
  %v235 = vand.u32 %v173, 4294901760
  %236 = vmatprep.subr.mxu0 %v235
  %v237 = vand.u32 %v172, 4294901760
  %238 = vmatpush1.msra.mxu0 %v237
  %v239 = vand.u32 %v175, 4294901760
  %240 = vmatprep.subr.mxu0 %v239
  %v241 = vand.u32 %v174, 4294901760
  %242 = vmatpush1.msra.mxu0 %v241
  %v243 = vand.u32 %v177, 4294901760
  %244 = vmatprep.subr.mxu0 %v243
  %v245 = vand.u32 %v176, 4294901760
  %246 = vmatpush1.msra.mxu0 %v245
  %v247 = vand.u32 %v179, 4294901760
  %248 = vmatprep.subr.mxu0 %v247
  %v249 = vand.u32 %v178, 4294901760
  %250 = vmatpush1.msra.mxu0 %v249
  %v251 = vand.u32 %v181, 4294901760
  %252 = vmatprep.subr.mxu0 %v251
  %v253 = vand.u32 %v180, 4294901760
  %254 = vmatpush1.msra.mxu0 %v253
  %255 = vmatprep.subr.mxu0 0.0
  %256 = vmatpush1.msra.mxu0 0.0
  %257 = vmatprep.subr.mxu0 0.0
  %258 = vmatpush1.msra.mxu0 0.0
  %259 = vmatprep.subr.mxu0 0.0
  %260 = vmatpush1.msra.mxu0 0.0
  %261 = vmatprep.subr.mxu0 0.0
  %262 = vmatpush1.msra.mxu0 0.0
  %263 = vmatprep.subr.mxu0 0.0
  %264 = vmatpush1.msra.mxu0 0.0
  %265 = vmatprep.subr.mxu0 0.0
  %266 = vmatpush1.msra.mxu0 0.0
  %267 = vmatprep.subr.mxu0 0.0
  %268 = vmatpush1.msra.mxu0 0.0
  %269 = vmatprep.subr.mxu0 0.0
  %270 = vmatpush1.msra.mxu0 0.0
  %271 = vmatprep.subr.mxu0 0.0
  %272 = vmatpush1.msra.mxu0 0.0
  %273 = vmatprep.subr.mxu0 0.0
  %274 = vmatpush1.msra.mxu0 0.0
  %275 = vmatprep.subr.mxu0 0.0
  %276 = vmatpush1.msra.mxu0 0.0
  %277 = vmatprep.subr.mxu0 0.0
  %278 = vmatpush1.msra.mxu0 0.0
  %279 = vmatprep.subr.mxu0 0.0
  %280 = vmatpush1.msra.mxu0 0.0
  %281 = vmatprep.subr.mxu0 0.0
  %282 = vmatpush1.msra.mxu0 0.0
  %283 = vmatprep.subr.mxu0 0.0
  %284 = vmatpush1.msra.mxu0 0.0
  %285 = vmatprep.subr.mxu0 0.0
  %286 = vmatpush1.msra.mxu0 0.0
  %287 = vmatprep.subr.mxu0 0.0
  %288 = vmatpush1.msra.mxu0 0.0
  %289 = vmatprep.subr.mxu0 0.0
  %290 = vmatpush1.msra.mxu0 0.0
  %291 = vmatprep.subr.mxu0 0.0
  %292 = vmatpush1.msra.mxu0 0.0
  %293 = vmatprep.subr.mxu0 0.0
  %294 = vmatpush1.msra.mxu0 0.0
  %295 = vmatprep.subr.mxu0 0.0
  %296 = vmatpush1.msra.mxu0 0.0
  %297 = vmatprep.subr.mxu0 0.0
  %298 = vmatpush1.msra.mxu0 0.0
  %299 = vmatprep.subr.mxu0 0.0
  %300 = vmatpush1.msra.mxu0 0.0
  %301 = vmatprep.subr.mxu0 0.0
  %302 = vmatpush1.msra.mxu0 0.0
  %303 = vmatprep.mubr.f32.mxu0 0.0
  %v304 = vand.u32 %v212, 4294901760
  %v305 = vsub.f32 %v212, %v304
  %v306 = vand.u32 %v305, 4294901760
  %v307 = vsub.f32 %v305, %v306
  %v308 = vand.u32 %v307, 4294901760
  %309 = vmatmul.mubr.f32.gmra.mrb[0].mxu0 %v308
  %v310 = vpop.f32.mrb[0].mxu0
  %v311 = vadd.f32 %v193, %v310
  %v312 = vpop.f32.mrb[0].mxu0
  %v313 = vadd.f32 %v193, %v312
  %314 = vmatprep.mubr.f32.mxu0 0.0
  %v315 = vand.u32 %v215, 4294901760
  %v316 = vsub.f32 %v215, %v315
  %v317 = vand.u32 %v316, 4294901760
  %v318 = vsub.f32 %v316, %v317
  %v319 = vand.u32 %v318, 4294901760
  %320 = vmatmul.mubr.f32.gmra.mrb[0].mxu0 %v319
  %v321 = vpop.f32.mrb[0].mxu0
  %v322 = vadd.f32 %v198, %v321
  %v323 = vpop.f32.mrb[0].mxu0
  %v324 = vadd.f32 %v198, %v323
  %325 = vmatprep.mubr.f32.mxu0 0.0
  %v326 = vand.u32 %v218, 4294901760
  %v327 = vsub.f32 %v218, %v326
  %v328 = vand.u32 %v327, 4294901760
  %v329 = vsub.f32 %v327, %v328
  %v330 = vand.u32 %v329, 4294901760
  %331 = vmatmul.mubr.f32.gmra.mrb[0].mxu0 %v330
  %v332 = vpop.f32.mrb[0].mxu0
  %v333 = vadd.f32 %v203, %v332
  %v334 = vpop.f32.mrb[0].mxu0
  %v335 = vadd.f32 %v203, %v334
  %336 = vmatprep.mubr.f32.mxu0 0.0
  %v337 = vand.u32 %v221, 4294901760
  %v338 = vsub.f32 %v221, %v337
  %v339 = vand.u32 %v338, 4294901760
  %v340 = vsub.f32 %v338, %v339
  %v341 = vand.u32 %v340, 4294901760
  %342 = vmatmul.mubr.f32.gmra.mrb[0].mxu0 %v341
  %v343 = vpop.f32.mrb[0].mxu0
  %v344 = vadd.f32 %v208, %v343
  %v345 = vpop.f32.mrb[0].mxu0
  %v346 = vadd.f32 %v208, %v345
  %347 = vdwg.mxu0
  %v348 = vand.u32 %v167, 4294901760
  %v349 = vsub.f32 %v167, %v348
  %v350 = vand.u32 %v349, 4294901760
  %v351 = vsub.f32 %v349, %v350
  %v352 = vand.u32 %v351, 4294901760
  %353 = vmatprep.subr.mxu0 %v352
  %v354 = vand.u32 %v166, 4294901760
  %v355 = vsub.f32 %v166, %v354
  %v356 = vand.u32 %v355, 4294901760
  %v357 = vsub.f32 %v355, %v356
  %v358 = vand.u32 %v357, 4294901760
  %359 = vmatpush1.msra.mxu0 %v358
  %v360 = vand.u32 %v169, 4294901760
  %v361 = vsub.f32 %v169, %v360
  %v362 = vand.u32 %v361, 4294901760
  %v363 = vsub.f32 %v361, %v362
  %v364 = vand.u32 %v363, 4294901760
  %365 = vmatprep.subr.mxu0 %v364
  %v366 = vand.u32 %v168, 4294901760
  %v367 = vsub.f32 %v168, %v366
  %v368 = vand.u32 %v367, 4294901760
  %v369 = vsub.f32 %v367, %v368
  %v370 = vand.u32 %v369, 4294901760
  %371 = vmatpush1.msra.mxu0 %v370
  %v372 = vand.u32 %v171, 4294901760
  %v373 = vsub.f32 %v171, %v372
  %v374 = vand.u32 %v373, 4294901760
  %v375 = vsub.f32 %v373, %v374
  %v376 = vand.u32 %v375, 4294901760
  %377 = vmatprep.subr.mxu0 %v376
  %v378 = vand.u32 %v170, 4294901760
  %v379 = vsub.f32 %v170, %v378
  %v380 = vand.u32 %v379, 4294901760
  %v381 = vsub.f32 %v379, %v380
  %v382 = vand.u32 %v381, 4294901760
  %383 = vmatpush1.msra.mxu0 %v382
  %v384 = vand.u32 %v173, 4294901760
  %v385 = vsub.f32 %v173, %v384
  %v386 = vand.u32 %v385, 4294901760
  %v387 = vsub.f32 %v385, %v386
  %v388 = vand.u32 %v387, 4294901760
  %389 = vmatprep.subr.mxu0 %v388
  %v390 = vand.u32 %v172, 4294901760
  %v391 = vsub.f32 %v172, %v390
  %v392 = vand.u32 %v391, 4294901760
  %v393 = vsub.f32 %v391, %v392
  %v394 = vand.u32 %v393, 4294901760
  %395 = vmatpush1.msra.mxu0 %v394
  %v396 = vand.u32 %v175, 4294901760
  %v397 = vsub.f32 %v175, %v396
  %v398 = vand.u32 %v397, 4294901760
  %v399 = vsub.f32 %v397, %v398
  %v400 = vand.u32 %v399, 4294901760
  %401 = vmatprep.subr.mxu0 %v400
  %v402 = vand.u32 %v174, 4294901760
  %v403 = vsub.f32 %v174, %v402
  %v404 = vand.u32 %v403, 4294901760
  %v405 = vsub.f32 %v403, %v404
  %v406 = vand.u32 %v405, 4294901760
  %407 = vmatpush1.msra.mxu0 %v406
  %v408 = vand.u32 %v177, 4294901760
  %v409 = vsub.f32 %v177, %v408
  %v410 = vand.u32 %v409, 4294901760
  %v411 = vsub.f32 %v409, %v410
  %v412 = vand.u32 %v411, 4294901760
  %413 = vmatprep.subr.mxu0 %v412
  %v414 = vand.u32 %v176, 4294901760
  %v415 = vsub.f32 %v176, %v414
  %v416 = vand.u32 %v415, 4294901760
  %v417 = vsub.f32 %v415, %v416
  %v418 = vand.u32 %v417, 4294901760
  %419 = vmatpush1.msra.mxu0 %v418
  %v420 = vand.u32 %v179, 4294901760
  %v421 = vsub.f32 %v179, %v420
  %v422 = vand.u32 %v421, 4294901760
  %v423 = vsub.f32 %v421, %v422
  %v424 = vand.u32 %v423, 4294901760
  %425 = vmatprep.subr.mxu0 %v424
  %v426 = vand.u32 %v178, 4294901760
  %v427 = vsub.f32 %v178, %v426
  %v428 = vand.u32 %v427, 4294901760
  %v429 = vsub.f32 %v427, %v428
  %v430 = vand.u32 %v429, 4294901760
  %431 = vmatpush1.msra.mxu0 %v430
  %v432 = vand.u32 %v181, 4294901760
  %v433 = vsub.f32 %v181, %v432
  %v434 = vand.u32 %v433, 4294901760
  %v435 = vsub.f32 %v433, %v434
  %v436 = vand.u32 %v435, 4294901760
  %437 = vmatprep.subr.mxu0 %v436
  %v438 = vand.u32 %v180, 4294901760
  %v439 = vsub.f32 %v180, %v438
  %v440 = vand.u32 %v439, 4294901760
  %v441 = vsub.f32 %v439, %v440
  %v442 = vand.u32 %v441, 4294901760
  %443 = vmatpush1.msra.mxu0 %v442
  %444 = vmatprep.subr.mxu0 0.0
  %445 = vmatpush1.msra.mxu0 0.0
  %446 = vmatprep.subr.mxu0 0.0
  %447 = vmatpush1.msra.mxu0 0.0
  %448 = vmatprep.subr.mxu0 0.0
  %449 = vmatpush1.msra.mxu0 0.0
  %450 = vmatprep.subr.mxu0 0.0
  %451 = vmatpush1.msra.mxu0 0.0
  %452 = vmatprep.subr.mxu0 0.0
  %453 = vmatpush1.msra.mxu0 0.0
  %454 = vmatprep.subr.mxu0 0.0
  %455 = vmatpush1.msra.mxu0 0.0
  %456 = vmatprep.subr.mxu0 0.0
  %457 = vmatpush1.msra.mxu0 0.0
  %458 = vmatprep.subr.mxu0 0.0
  %459 = vmatpush1.msra.mxu0 0.0
  %460 = vmatprep.subr.mxu0 0.0
  %461 = vmatpush1.msra.mxu0 0.0
  %462 = vmatprep.subr.mxu0 0.0
  %463 = vmatpush1.msra.mxu0 0.0
  %464 = vmatprep.subr.mxu0 0.0
  %465 = vmatpush1.msra.mxu0 0.0
  %466 = vmatprep.subr.mxu0 0.0
  %467 = vmatpush1.msra.mxu0 0.0
  %468 = vmatprep.subr.mxu0 0.0
  %469 = vmatpush1.msra.mxu0 0.0
  %470 = vmatprep.subr.mxu0 0.0
  %471 = vmatpush1.msra.mxu0 0.0
  %472 = vmatprep.subr.mxu0 0.0
  %473 = vmatpush1.msra.mxu0 0.0
  %474 = vmatprep.subr.mxu0 0.0
  %475 = vmatpush1.msra.mxu0 0.0
  %476 = vmatprep.subr.mxu0 0.0
  %477 = vmatpush1.msra.mxu0 0.0
  %478 = vmatprep.subr.mxu0 0.0
  %479 = vmatpush1.msra.mxu0 0.0
  %480 = vmatprep.subr.mxu0 0.0
  %481 = vmatpush1.msra.mxu0 0.0
  %482 = vmatprep.subr.mxu0 0.0
  %483 = vmatpush1.msra.mxu0 0.0
  %484 = vmatprep.subr.mxu0 0.0
  %485 = vmatpush1.msra.mxu0 0.0
  %486 = vmatprep.subr.mxu0 0.0
  %487 = vmatpush1.msra.mxu0 0.0
  %488 = vmatprep.subr.mxu0 0.0
  %489 = vmatpush1.msra.mxu0 0.0
  %490 = vmatprep.subr.mxu0 0.0
  %491 = vmatpush1.msra.mxu0 0.0
  %492 = vmatprep.mubr.f32.mxu0 0.0
  %v493 = vand.u32 %v212, 4294901760
  %494 = vmatmul.mubr.f32.gmra.mrb[0].mxu0 %v493
  %v495 = vpop.f32.mrb[0].mxu0
  %v496 = vadd.f32 %v311, %v495
  %v497 = vpop.f32.mrb[0].mxu0
  %v498 = vadd.f32 %v313, %v497
  %499 = vmatprep.mubr.f32.mxu0 0.0
  %v500 = vand.u32 %v215, 4294901760
  %501 = vmatmul.mubr.f32.gmra.mrb[0].mxu0 %v500
  %v502 = vpop.f32.mrb[0].mxu0
  %v503 = vadd.f32 %v322, %v502
  %v504 = vpop.f32.mrb[0].mxu0
  %v505 = vadd.f32 %v324, %v504
  %506 = vmatprep.mubr.f32.mxu0 0.0
  %v507 = vand.u32 %v218, 4294901760
  %508 = vmatmul.mubr.f32.gmra.mrb[0].mxu0 %v507
  %v509 = vpop.f32.mrb[0].mxu0
  %v510 = vadd.f32 %v333, %v509
  %v511 = vpop.f32.mrb[0].mxu0
  %v512 = vadd.f32 %v335, %v511
  %513 = vmatprep.mubr.f32.mxu0 0.0
  %v514 = vand.u32 %v221, 4294901760
  %515 = vmatmul.mubr.f32.gmra.mrb[0].mxu0 %v514
  %v516 = vpop.f32.mrb[0].mxu0
  %v517 = vadd.f32 %v344, %v516
  %v518 = vpop.f32.mrb[0].mxu0
  %v519 = vadd.f32 %v346, %v518
  %520 = vdwg.mxu0
  %v521 = vand.u32 %v167, 4294901760
  %v522 = vsub.f32 %v167, %v521
  %523 = vmatprep.subr.mxu0 %v522
  %v524 = vand.u32 %v166, 4294901760
  %v525 = vsub.f32 %v166, %v524
  %526 = vmatpush1.msra.mxu0 %v525
  %v527 = vand.u32 %v169, 4294901760
  %v528 = vsub.f32 %v169, %v527
  %529 = vmatprep.subr.mxu0 %v528
  %v530 = vand.u32 %v168, 4294901760
  %v531 = vsub.f32 %v168, %v530
  %532 = vmatpush1.msra.mxu0 %v531
  %v533 = vand.u32 %v171, 4294901760
  %v534 = vsub.f32 %v171, %v533
  %535 = vmatprep.subr.mxu0 %v534
  %v536 = vand.u32 %v170, 4294901760
  %v537 = vsub.f32 %v170, %v536
  %538 = vmatpush1.msra.mxu0 %v537
  %v539 = vand.u32 %v173, 4294901760
  %v540 = vsub.f32 %v173, %v539
  %541 = vmatprep.subr.mxu0 %v540
  %v542 = vand.u32 %v172, 4294901760
  %v543 = vsub.f32 %v172, %v542
  %544 = vmatpush1.msra.mxu0 %v543
  %v545 = vand.u32 %v175, 4294901760
  %v546 = vsub.f32 %v175, %v545
  %547 = vmatprep.subr.mxu0 %v546
  %v548 = vand.u32 %v174, 4294901760
  %v549 = vsub.f32 %v174, %v548
  %550 = vmatpush1.msra.mxu0 %v549
  %v551 = vand.u32 %v177, 4294901760
  %v552 = vsub.f32 %v177, %v551
  %553 = vmatprep.subr.mxu0 %v552
  %v554 = vand.u32 %v176, 4294901760
  %v555 = vsub.f32 %v176, %v554
  %556 = vmatpush1.msra.mxu0 %v555
  %v557 = vand.u32 %v179, 4294901760
  %v558 = vsub.f32 %v179, %v557
  %559 = vmatprep.subr.mxu0 %v558
  %v560 = vand.u32 %v178, 4294901760
  %v561 = vsub.f32 %v178, %v560
  %562 = vmatpush1.msra.mxu0 %v561
  %v563 = vand.u32 %v181, 4294901760
  %v564 = vsub.f32 %v181, %v563
  %565 = vmatprep.subr.mxu0 %v564
  %v566 = vand.u32 %v180, 4294901760
  %v567 = vsub.f32 %v180, %v566
  %568 = vmatpush1.msra.mxu0 %v567
  %569 = vmatprep.subr.mxu0 0.0
  %570 = vmatpush1.msra.mxu0 0.0
  %571 = vmatprep.subr.mxu0 0.0
  %572 = vmatpush1.msra.mxu0 0.0
  %573 = vmatprep.subr.mxu0 0.0
  %574 = vmatpush1.msra.mxu0 0.0
  %575 = vmatprep.subr.mxu0 0.0
  %576 = vmatpush1.msra.mxu0 0.0
  %577 = vmatprep.subr.mxu0 0.0
  %578 = vmatpush1.msra.mxu0 0.0
  %579 = vmatprep.subr.mxu0 0.0
  %580 = vmatpush1.msra.mxu0 0.0
  %581 = vmatprep.subr.mxu0 0.0
  %582 = vmatpush1.msra.mxu0 0.0
  %583 = vmatprep.subr.mxu0 0.0
  %584 = vmatpush1.msra.mxu0 0.0
  %585 = vmatprep.subr.mxu0 0.0
  %586 = vmatpush1.msra.mxu0 0.0
  %587 = vmatprep.subr.mxu0 0.0
  %588 = vmatpush1.msra.mxu0 0.0
  %589 = vmatprep.subr.mxu0 0.0
  %590 = vmatpush1.msra.mxu0 0.0
  %591 = vmatprep.subr.mxu0 0.0
  %592 = vmatpush1.msra.mxu0 0.0
  %593 = vmatprep.subr.mxu0 0.0
  %594 = vmatpush1.msra.mxu0 0.0
  %595 = vmatprep.subr.mxu0 0.0
  %596 = vmatpush1.msra.mxu0 0.0
  %597 = vmatprep.subr.mxu0 0.0
  %598 = vmatpush1.msra.mxu0 0.0
  %599 = vmatprep.subr.mxu0 0.0
  %600 = vmatpush1.msra.mxu0 0.0
  %601 = vmatprep.subr.mxu0 0.0
  %602 = vmatpush1.msra.mxu0 0.0
  %603 = vmatprep.subr.mxu0 0.0
  %604 = vmatpush1.msra.mxu0 0.0
  %605 = vmatprep.subr.mxu0 0.0
  %606 = vmatpush1.msra.mxu0 0.0
  %607 = vmatprep.subr.mxu0 0.0
  %608 = vmatpush1.msra.mxu0 0.0
  %609 = vmatprep.subr.mxu0 0.0
  %610 = vmatpush1.msra.mxu0 0.0
  %611 = vmatprep.subr.mxu0 0.0
  %612 = vmatpush1.msra.mxu0 0.0
  %613 = vmatprep.subr.mxu0 0.0
  %614 = vmatpush1.msra.mxu0 0.0
  %615 = vmatprep.subr.mxu0 0.0
  %616 = vmatpush1.msra.mxu0 0.0
  %617 = vmatprep.mubr.f32.mxu0 0.0
  %v618 = vand.u32 %v212, 4294901760
  %v619 = vsub.f32 %v212, %v618
  %620 = vmatmul.mubr.f32.gmra.mrb[0].mxu0 %v619
  %v621 = vpop.f32.mrb[0].mxu0
  %v622 = vadd.f32 %v496, %v621
  %v623 = vpop.f32.mrb[0].mxu0
  %v624 = vadd.f32 %v498, %v623
  %625 = vmatprep.mubr.f32.mxu0 0.0
  %v626 = vand.u32 %v215, 4294901760
  %v627 = vsub.f32 %v215, %v626
  %628 = vmatmul.mubr.f32.gmra.mrb[0].mxu0 %v627
  %v629 = vpop.f32.mrb[0].mxu0
  %v630 = vadd.f32 %v503, %v629
  %v631 = vpop.f32.mrb[0].mxu0
  %v632 = vadd.f32 %v505, %v631
  %633 = vmatprep.mubr.f32.mxu0 0.0
  %v634 = vand.u32 %v218, 4294901760
  %v635 = vsub.f32 %v218, %v634
  %636 = vmatmul.mubr.f32.gmra.mrb[0].mxu0 %v635
  %v637 = vpop.f32.mrb[0].mxu0
  %v638 = vadd.f32 %v510, %v637
  %v639 = vpop.f32.mrb[0].mxu0
  %v640 = vadd.f32 %v512, %v639
  %641 = vmatprep.mubr.f32.mxu0 0.0
  %v642 = vand.u32 %v221, 4294901760
  %v643 = vsub.f32 %v221, %v642
  %644 = vmatmul.mubr.f32.gmra.mrb[0].mxu0 %v643
  %v645 = vpop.f32.mrb[0].mxu0
  %v646 = vadd.f32 %v517, %v645
  %v647 = vpop.f32.mrb[0].mxu0
  %v648 = vadd.f32 %v519, %v647
  %649 = vdwg.mxu0
  %v650 = vand.u32 %v167, 4294901760
  %651 = vmatprep.subr.mxu0 %v650
  %v652 = vand.u32 %v166, 4294901760
  %653 = vmatpush1.msra.mxu0 %v652
  %v654 = vand.u32 %v169, 4294901760
  %655 = vmatprep.subr.mxu0 %v654
  %v656 = vand.u32 %v168, 4294901760
  %657 = vmatpush1.msra.mxu0 %v656
  %v658 = vand.u32 %v171, 4294901760
  %659 = vmatprep.subr.mxu0 %v658
  %v660 = vand.u32 %v170, 4294901760
  %661 = vmatpush1.msra.mxu0 %v660
  %v662 = vand.u32 %v173, 4294901760
  %663 = vmatprep.subr.mxu0 %v662
  %v664 = vand.u32 %v172, 4294901760
  %665 = vmatpush1.msra.mxu0 %v664
  %v666 = vand.u32 %v175, 4294901760
  %667 = vmatprep.subr.mxu0 %v666
  %v668 = vand.u32 %v174, 4294901760
  %669 = vmatpush1.msra.mxu0 %v668
  %v670 = vand.u32 %v177, 4294901760
  %671 = vmatprep.subr.mxu0 %v670
  %v672 = vand.u32 %v176, 4294901760
  %673 = vmatpush1.msra.mxu0 %v672
  %v674 = vand.u32 %v179, 4294901760
  %675 = vmatprep.subr.mxu0 %v674
  %v676 = vand.u32 %v178, 4294901760
  %677 = vmatpush1.msra.mxu0 %v676
  %v678 = vand.u32 %v181, 4294901760
  %679 = vmatprep.subr.mxu0 %v678
  %v680 = vand.u32 %v180, 4294901760
  %681 = vmatpush1.msra.mxu0 %v680
  %682 = vmatprep.subr.mxu0 0.0
  %683 = vmatpush1.msra.mxu0 0.0
  %684 = vmatprep.subr.mxu0 0.0
  %685 = vmatpush1.msra.mxu0 0.0
  %686 = vmatprep.subr.mxu0 0.0
  %687 = vmatpush1.msra.mxu0 0.0
  %688 = vmatprep.subr.mxu0 0.0
  %689 = vmatpush1.msra.mxu0 0.0
  %690 = vmatprep.subr.mxu0 0.0
  %691 = vmatpush1.msra.mxu0 0.0
  %692 = vmatprep.subr.mxu0 0.0
  %693 = vmatpush1.msra.mxu0 0.0
  %694 = vmatprep.subr.mxu0 0.0
  %695 = vmatpush1.msra.mxu0 0.0
  %696 = vmatprep.subr.mxu0 0.0
  %697 = vmatpush1.msra.mxu0 0.0
  %698 = vmatprep.subr.mxu0 0.0
  %699 = vmatpush1.msra.mxu0 0.0
  %700 = vmatprep.subr.mxu0 0.0
  %701 = vmatpush1.msra.mxu0 0.0
  %702 = vmatprep.subr.mxu0 0.0
  %703 = vmatpush1.msra.mxu0 0.0
  %704 = vmatprep.subr.mxu0 0.0
  %705 = vmatpush1.msra.mxu0 0.0
  %706 = vmatprep.subr.mxu0 0.0
  %707 = vmatpush1.msra.mxu0 0.0
  %708 = vmatprep.subr.mxu0 0.0
  %709 = vmatpush1.msra.mxu0 0.0
  %710 = vmatprep.subr.mxu0 0.0
  %711 = vmatpush1.msra.mxu0 0.0
  %712 = vmatprep.subr.mxu0 0.0
  %713 = vmatpush1.msra.mxu0 0.0
  %714 = vmatprep.subr.mxu0 0.0
  %715 = vmatpush1.msra.mxu0 0.0
  %716 = vmatprep.subr.mxu0 0.0
  %717 = vmatpush1.msra.mxu0 0.0
  %718 = vmatprep.subr.mxu0 0.0
  %719 = vmatpush1.msra.mxu0 0.0
  %720 = vmatprep.subr.mxu0 0.0
  %721 = vmatpush1.msra.mxu0 0.0
  %722 = vmatprep.subr.mxu0 0.0
  %723 = vmatpush1.msra.mxu0 0.0
  %724 = vmatprep.subr.mxu0 0.0
  %725 = vmatpush1.msra.mxu0 0.0
  %726 = vmatprep.subr.mxu0 0.0
  %727 = vmatpush1.msra.mxu0 0.0
  %728 = vmatprep.subr.mxu0 0.0
  %729 = vmatpush1.msra.mxu0 0.0
  %730 = vmatprep.mubr.f32.mxu0 0.0
  %v731 = vand.u32 %v212, 4294901760
  %v732 = vsub.f32 %v212, %v731
  %v733 = vand.u32 %v732, 4294901760
  %734 = vmatmul.mubr.f32.gmra.mrb[0].mxu0 %v733
  %v735 = vpop.f32.mrb[0].mxu0
  %v736 = vadd.f32 %v622, %v735
  %v737 = vpop.f32.mrb[0].mxu0
  %v738 = vadd.f32 %v624, %v737
  %739 = vmatprep.mubr.f32.mxu0 0.0
  %v740 = vand.u32 %v215, 4294901760
  %v741 = vsub.f32 %v215, %v740
  %v742 = vand.u32 %v741, 4294901760
  %743 = vmatmul.mubr.f32.gmra.mrb[0].mxu0 %v742
  %v744 = vpop.f32.mrb[0].mxu0
  %v745 = vadd.f32 %v630, %v744
  %v746 = vpop.f32.mrb[0].mxu0
  %v747 = vadd.f32 %v632, %v746
  %748 = vmatprep.mubr.f32.mxu0 0.0
  %v749 = vand.u32 %v218, 4294901760
  %v750 = vsub.f32 %v218, %v749
  %v751 = vand.u32 %v750, 4294901760
  %752 = vmatmul.mubr.f32.gmra.mrb[0].mxu0 %v751
  %v753 = vpop.f32.mrb[0].mxu0
  %v754 = vadd.f32 %v638, %v753
  %v755 = vpop.f32.mrb[0].mxu0
  %v756 = vadd.f32 %v640, %v755
  %757 = vmatprep.mubr.f32.mxu0 0.0
  %v758 = vand.u32 %v221, 4294901760
  %v759 = vsub.f32 %v221, %v758
  %v760 = vand.u32 %v759, 4294901760
  %761 = vmatmul.mubr.f32.gmra.mrb[0].mxu0 %v760
  %v762 = vpop.f32.mrb[0].mxu0
  %v763 = vadd.f32 %v646, %v762
  %v764 = vpop.f32.mrb[0].mxu0
  %v765 = vadd.f32 %v648, %v764
  %766 = vdwg.mxu0
  %v767 = vand.u32 %v167, 4294901760
  %v768 = vsub.f32 %v167, %v767
  %v769 = vand.u32 %v768, 4294901760
  %770 = vmatprep.subr.mxu0 %v769
  %v771 = vand.u32 %v166, 4294901760
  %v772 = vsub.f32 %v166, %v771
  %v773 = vand.u32 %v772, 4294901760
  %774 = vmatpush1.msra.mxu0 %v773
  %v775 = vand.u32 %v169, 4294901760
  %v776 = vsub.f32 %v169, %v775
  %v777 = vand.u32 %v776, 4294901760
  %778 = vmatprep.subr.mxu0 %v777
  %v779 = vand.u32 %v168, 4294901760
  %v780 = vsub.f32 %v168, %v779
  %v781 = vand.u32 %v780, 4294901760
  %782 = vmatpush1.msra.mxu0 %v781
  %v783 = vand.u32 %v171, 4294901760
  %v784 = vsub.f32 %v171, %v783
  %v785 = vand.u32 %v784, 4294901760
  %786 = vmatprep.subr.mxu0 %v785
  %v787 = vand.u32 %v170, 4294901760
  %v788 = vsub.f32 %v170, %v787
  %v789 = vand.u32 %v788, 4294901760
  %790 = vmatpush1.msra.mxu0 %v789
  %v791 = vand.u32 %v173, 4294901760
  %v792 = vsub.f32 %v173, %v791
  %v793 = vand.u32 %v792, 4294901760
  %794 = vmatprep.subr.mxu0 %v793
  %v795 = vand.u32 %v172, 4294901760
  %v796 = vsub.f32 %v172, %v795
  %v797 = vand.u32 %v796, 4294901760
  %798 = vmatpush1.msra.mxu0 %v797
  %v799 = vand.u32 %v175, 4294901760
  %v800 = vsub.f32 %v175, %v799
  %v801 = vand.u32 %v800, 4294901760
  %802 = vmatprep.subr.mxu0 %v801
  %v803 = vand.u32 %v174, 4294901760
  %v804 = vsub.f32 %v174, %v803
  %v805 = vand.u32 %v804, 4294901760
  %806 = vmatpush1.msra.mxu0 %v805
  %v807 = vand.u32 %v177, 4294901760
  %v808 = vsub.f32 %v177, %v807
  %v809 = vand.u32 %v808, 4294901760
  %810 = vmatprep.subr.mxu0 %v809
  %v811 = vand.u32 %v176, 4294901760
  %v812 = vsub.f32 %v176, %v811
  %v813 = vand.u32 %v812, 4294901760
  %814 = vmatpush1.msra.mxu0 %v813
  %v815 = vand.u32 %v179, 4294901760
  %v816 = vsub.f32 %v179, %v815
  %v817 = vand.u32 %v816, 4294901760
  %818 = vmatprep.subr.mxu0 %v817
  %v819 = vand.u32 %v178, 4294901760
  %v820 = vsub.f32 %v178, %v819
  %v821 = vand.u32 %v820, 4294901760
  %822 = vmatpush1.msra.mxu0 %v821
  %v823 = vand.u32 %v181, 4294901760
  %v824 = vsub.f32 %v181, %v823
  %v825 = vand.u32 %v824, 4294901760
  %826 = vmatprep.subr.mxu0 %v825
  %v827 = vand.u32 %v180, 4294901760
  %v828 = vsub.f32 %v180, %v827
  %v829 = vand.u32 %v828, 4294901760
  %830 = vmatpush1.msra.mxu0 %v829
  %831 = vmatprep.subr.mxu0 0.0
  %832 = vmatpush1.msra.mxu0 0.0
  %833 = vmatprep.subr.mxu0 0.0
  %834 = vmatpush1.msra.mxu0 0.0
  %835 = vmatprep.subr.mxu0 0.0
  %836 = vmatpush1.msra.mxu0 0.0
  %837 = vmatprep.subr.mxu0 0.0
  %838 = vmatpush1.msra.mxu0 0.0
  %839 = vmatprep.subr.mxu0 0.0
  %840 = vmatpush1.msra.mxu0 0.0
  %841 = vmatprep.subr.mxu0 0.0
  %842 = vmatpush1.msra.mxu0 0.0
  %843 = vmatprep.subr.mxu0 0.0
  %844 = vmatpush1.msra.mxu0 0.0
  %845 = vmatprep.subr.mxu0 0.0
  %846 = vmatpush1.msra.mxu0 0.0
  %847 = vmatprep.subr.mxu0 0.0
  %848 = vmatpush1.msra.mxu0 0.0
  %849 = vmatprep.subr.mxu0 0.0
  %850 = vmatpush1.msra.mxu0 0.0
  %851 = vmatprep.subr.mxu0 0.0
  %852 = vmatpush1.msra.mxu0 0.0
  %853 = vmatprep.subr.mxu0 0.0
  %854 = vmatpush1.msra.mxu0 0.0
  %855 = vmatprep.subr.mxu0 0.0
  %856 = vmatpush1.msra.mxu0 0.0
  %857 = vmatprep.subr.mxu0 0.0
  %858 = vmatpush1.msra.mxu0 0.0
  %859 = vmatprep.subr.mxu0 0.0
  %860 = vmatpush1.msra.mxu0 0.0
  %861 = vmatprep.subr.mxu0 0.0
  %862 = vmatpush1.msra.mxu0 0.0
  %863 = vmatprep.subr.mxu0 0.0
  %864 = vmatpush1.msra.mxu0 0.0
  %865 = vmatprep.subr.mxu0 0.0
  %866 = vmatpush1.msra.mxu0 0.0
  %867 = vmatprep.subr.mxu0 0.0
  %868 = vmatpush1.msra.mxu0 0.0
  %869 = vmatprep.subr.mxu0 0.0
  %870 = vmatpush1.msra.mxu0 0.0
  %871 = vmatprep.subr.mxu0 0.0
  %872 = vmatpush1.msra.mxu0 0.0
  %873 = vmatprep.subr.mxu0 0.0
  %874 = vmatpush1.msra.mxu0 0.0
  %875 = vmatprep.subr.mxu0 0.0
  %876 = vmatpush1.msra.mxu0 0.0
  %877 = vmatprep.subr.mxu0 0.0
  %878 = vmatpush1.msra.mxu0 0.0
  %879 = vmatprep.mubr.f32.mxu0 0.0
  %v880 = vand.u32 %v212, 4294901760
  %881 = vmatmul.mubr.f32.gmra.mrb[0].mxu0 %v880
  %v882 = vpop.f32.mrb[0].mxu0
  %v883 = vadd.f32 %v736, %v882
  %v884 = vpop.f32.mrb[0].mxu0
  %v885 = vadd.f32 %v738, %v884
  %886 = vmatprep.mubr.f32.mxu0 0.0
  %v887 = vand.u32 %v215, 4294901760
  %888 = vmatmul.mubr.f32.gmra.mrb[0].mxu0 %v887
  %v889 = vpop.f32.mrb[0].mxu0
  %v890 = vadd.f32 %v745, %v889
  %v891 = vpop.f32.mrb[0].mxu0
  %v892 = vadd.f32 %v747, %v891
  %893 = vmatprep.mubr.f32.mxu0 0.0
  %v894 = vand.u32 %v218, 4294901760
  %895 = vmatmul.mubr.f32.gmra.mrb[0].mxu0 %v894
  %v896 = vpop.f32.mrb[0].mxu0
  %v897 = vadd.f32 %v754, %v896
  %v898 = vpop.f32.mrb[0].mxu0
  %v899 = vadd.f32 %v756, %v898
  %900 = vmatprep.mubr.f32.mxu0 0.0
  %v901 = vand.u32 %v221, 4294901760
  %902 = vmatmul.mubr.f32.gmra.mrb[0].mxu0 %v901
  %v903 = vpop.f32.mrb[0].mxu0
  %v904 = vadd.f32 %v763, %v903
  %v905 = vpop.f32.mrb[0].mxu0
  %v906 = vadd.f32 %v765, %v905
  %907 = vdwg.mxu0
  %v908 = vand.u32 %v167, 4294901760
  %909 = vmatprep.subr.mxu0 %v908
  %v910 = vand.u32 %v166, 4294901760
  %911 = vmatpush1.msra.mxu0 %v910
  %v912 = vand.u32 %v169, 4294901760
  %913 = vmatprep.subr.mxu0 %v912
  %v914 = vand.u32 %v168, 4294901760
  %915 = vmatpush1.msra.mxu0 %v914
  %v916 = vand.u32 %v171, 4294901760
  %917 = vmatprep.subr.mxu0 %v916
  %v918 = vand.u32 %v170, 4294901760
  %919 = vmatpush1.msra.mxu0 %v918
  %v920 = vand.u32 %v173, 4294901760
  %921 = vmatprep.subr.mxu0 %v920
  %v922 = vand.u32 %v172, 4294901760
  %923 = vmatpush1.msra.mxu0 %v922
  %v924 = vand.u32 %v175, 4294901760
  %925 = vmatprep.subr.mxu0 %v924
  %v926 = vand.u32 %v174, 4294901760
  %927 = vmatpush1.msra.mxu0 %v926
  %v928 = vand.u32 %v177, 4294901760
  %929 = vmatprep.subr.mxu0 %v928
  %v930 = vand.u32 %v176, 4294901760
  %931 = vmatpush1.msra.mxu0 %v930
  %v932 = vand.u32 %v179, 4294901760
  %933 = vmatprep.subr.mxu0 %v932
  %v934 = vand.u32 %v178, 4294901760
  %935 = vmatpush1.msra.mxu0 %v934
  %v936 = vand.u32 %v181, 4294901760
  %937 = vmatprep.subr.mxu0 %v936
  %v938 = vand.u32 %v180, 4294901760
  %939 = vmatpush1.msra.mxu0 %v938
  %940 = vmatprep.subr.mxu0 0.0
  %941 = vmatpush1.msra.mxu0 0.0
  %942 = vmatprep.subr.mxu0 0.0
  %943 = vmatpush1.msra.mxu0 0.0
  %944 = vmatprep.subr.mxu0 0.0
  %945 = vmatpush1.msra.mxu0 0.0
  %946 = vmatprep.subr.mxu0 0.0
  %947 = vmatpush1.msra.mxu0 0.0
  %948 = vmatprep.subr.mxu0 0.0
  %949 = vmatpush1.msra.mxu0 0.0
  %950 = vmatprep.subr.mxu0 0.0
  %951 = vmatpush1.msra.mxu0 0.0
  %952 = vmatprep.subr.mxu0 0.0
  %953 = vmatpush1.msra.mxu0 0.0
  %954 = vmatprep.subr.mxu0 0.0
  %955 = vmatpush1.msra.mxu0 0.0
  %956 = vmatprep.subr.mxu0 0.0
  %957 = vmatpush1.msra.mxu0 0.0
  %958 = vmatprep.subr.mxu0 0.0
  %959 = vmatpush1.msra.mxu0 0.0
  %960 = vmatprep.subr.mxu0 0.0
  %961 = vmatpush1.msra.mxu0 0.0
  %962 = vmatprep.subr.mxu0 0.0
  %963 = vmatpush1.msra.mxu0 0.0
  %964 = vmatprep.subr.mxu0 0.0
  %965 = vmatpush1.msra.mxu0 0.0
  %966 = vmatprep.subr.mxu0 0.0
  %967 = vmatpush1.msra.mxu0 0.0
  %968 = vmatprep.subr.mxu0 0.0
  %969 = vmatpush1.msra.mxu0 0.0
  %970 = vmatprep.subr.mxu0 0.0
  %971 = vmatpush1.msra.mxu0 0.0
  %972 = vmatprep.subr.mxu0 0.0
  %973 = vmatpush1.msra.mxu0 0.0
  %974 = vmatprep.subr.mxu0 0.0
  %975 = vmatpush1.msra.mxu0 0.0
  %976 = vmatprep.subr.mxu0 0.0
  %977 = vmatpush1.msra.mxu0 0.0
  %978 = vmatprep.subr.mxu0 0.0
  %979 = vmatpush1.msra.mxu0 0.0
  %980 = vmatprep.subr.mxu0 0.0
  %981 = vmatpush1.msra.mxu0 0.0
  %982 = vmatprep.subr.mxu0 0.0
  %983 = vmatpush1.msra.mxu0 0.0
  %984 = vmatprep.subr.mxu0 0.0
  %985 = vmatpush1.msra.mxu0 0.0
  %986 = vmatprep.subr.mxu0 0.0
  %987 = vmatpush1.msra.mxu0 0.0
  %988 = vmatprep.mubr.f32.mxu0 0.0
  %v989 = vand.u32 %v212, 4294901760
  %990 = vmatmul.mubr.f32.gmra.mrb[0].mxu0 %v989
  %v991 = vpop.f32.mrb[0].mxu0
  %v992 = vadd.f32 %v883, %v991
  %v993 = vpop.f32.mrb[0].mxu0
  %v994 = vadd.f32 %v885, %v993
  %995 = vmatprep.mubr.f32.mxu0 0.0
  %v996 = vand.u32 %v215, 4294901760
  %997 = vmatmul.mubr.f32.gmra.mrb[0].mxu0 %v996
  %v998 = vpop.f32.mrb[0].mxu0
  %v999 = vadd.f32 %v890, %v998
  %v1000 = vpop.f32.mrb[0].mxu0
  %v1001 = vadd.f32 %v892, %v1000
  %1002 = vmatprep.mubr.f32.mxu0 0.0
  %v1003 = vand.u32 %v218, 4294901760
  %1004 = vmatmul.mubr.f32.gmra.mrb[0].mxu0 %v1003
  %v1005 = vpop.f32.mrb[0].mxu0
  %v1006 = vadd.f32 %v897, %v1005
  %v1007 = vpop.f32.mrb[0].mxu0
  %v1008 = vadd.f32 %v899, %v1007
  %1009 = vmatprep.mubr.f32.mxu0 0.0
  %v1010 = vand.u32 %v221, 4294901760
  %1011 = vmatmul.mubr.f32.gmra.mrb[0].mxu0 %v1010
  %v1012 = vpop.f32.mrb[0].mxu0
  %v1013 = vadd.f32 %v904, %v1012
  %v1014 = vpop.f32.mrb[0].mxu0
  %v1015 = vadd.f32 %v906, %v1014
  %1016 = vdwg.mxu0
  %v1017 = vmax.f32 %v992, 0.0
  %v1018 = vmax.f32 %v994, 0.0
  %v1019 = vmax.f32 %v999, 0.0
  %v1020 = vmax.f32 %v1001, 0.0
  %v1021 = vmax.f32 %v1006, 0.0
  %v1022 = vmax.f32 %v1008, 0.0
  %v1023 = vmax.f32 %v1013, 0.0
  %v1024 = vmax.f32 %v1015, 0.0
  %v1025 = vld [vmem:[%s5] sm:$0xff]
  %v1026 = vld [vmem:[%s6] sm:$0xff]
  %1028 = vset.pattern.permute.xlu0 0
  %1029 = vperm.xlu0 %1028, %v1026
  %v1030 = vpop.permute.xlu0 %1029
  %vm1032 = vcmask 261120
  %v1034 = vsel %vm1032, %v1025, 0
  %v1036 = vand.u32 %v1018, 4294901760
  %1037 = vmatprep.subr.mxu0 %v1036
  %v1038 = vand.u32 %v1017, 4294901760
  %1039 = vmatpush1.msra.mxu0 %v1038
  %v1040 = vand.u32 %v1020, 4294901760
  %1041 = vmatprep.subr.mxu0 %v1040
  %v1042 = vand.u32 %v1019, 4294901760
  %1043 = vmatpush1.msra.mxu0 %v1042
  %v1044 = vand.u32 %v1022, 4294901760
  %1045 = vmatprep.subr.mxu0 %v1044
  %v1046 = vand.u32 %v1021, 4294901760
  %1047 = vmatpush1.msra.mxu0 %v1046
  %v1048 = vand.u32 %v1024, 4294901760
  %1049 = vmatprep.subr.mxu0 %v1048
  %v1050 = vand.u32 %v1023, 4294901760
  %1051 = vmatpush1.msra.mxu0 %v1050
  %1052 = vmatprep.subr.mxu0 0.0
  %1053 = vmatpush1.msra.mxu0 0.0
  %1054 = vmatprep.subr.mxu0 0.0
  %1055 = vmatpush1.msra.mxu0 0.0
  %1056 = vmatprep.subr.mxu0 0.0
  %1057 = vmatpush1.msra.mxu0 0.0
  %1058 = vmatprep.subr.mxu0 0.0
  %1059 = vmatpush1.msra.mxu0 0.0
  %1060 = vmatprep.subr.mxu0 0.0
  %1061 = vmatpush1.msra.mxu0 0.0
  %1062 = vmatprep.subr.mxu0 0.0
  %1063 = vmatpush1.msra.mxu0 0.0
  %1064 = vmatprep.subr.mxu0 0.0
  %1065 = vmatpush1.msra.mxu0 0.0
  %1066 = vmatprep.subr.mxu0 0.0
  %1067 = vmatpush1.msra.mxu0 0.0
  %1068 = vmatprep.subr.mxu0 0.0
  %1069 = vmatpush1.msra.mxu0 0.0
  %1070 = vmatprep.subr.mxu0 0.0
  %1071 = vmatpush1.msra.mxu0 0.0
  %1072 = vmatprep.subr.mxu0 0.0
  %1073 = vmatpush1.msra.mxu0 0.0
  %1074 = vmatprep.subr.mxu0 0.0
  %1075 = vmatpush1.msra.mxu0 0.0
  %1076 = vmatprep.subr.mxu0 0.0
  %1077 = vmatpush1.msra.mxu0 0.0
  %1078 = vmatprep.subr.mxu0 0.0
  %1079 = vmatpush1.msra.mxu0 0.0
  %1080 = vmatprep.subr.mxu0 0.0
  %1081 = vmatpush1.msra.mxu0 0.0
  %1082 = vmatprep.subr.mxu0 0.0
  %1083 = vmatpush1.msra.mxu0 0.0
  %1084 = vmatprep.subr.mxu0 0.0
  %1085 = vmatpush1.msra.mxu0 0.0
  %1086 = vmatprep.subr.mxu0 0.0
  %1087 = vmatpush1.msra.mxu0 0.0
  %1088 = vmatprep.subr.mxu0 0.0
  %1089 = vmatpush1.msra.mxu0 0.0
  %1090 = vmatprep.subr.mxu0 0.0
  %1091 = vmatpush1.msra.mxu0 0.0
  %1092 = vmatprep.subr.mxu0 0.0
  %1093 = vmatpush1.msra.mxu0 0.0
  %1094 = vmatprep.subr.mxu0 0.0
  %1095 = vmatpush1.msra.mxu0 0.0
  %1096 = vmatprep.subr.mxu0 0.0
  %1097 = vmatpush1.msra.mxu0 0.0
  %1098 = vmatprep.subr.mxu0 0.0
  %1099 = vmatpush1.msra.mxu0 0.0
  %1100 = vmatprep.subr.mxu0 0.0
  %1101 = vmatpush1.msra.mxu0 0.0
  %1102 = vmatprep.subr.mxu0 0.0
  %1103 = vmatpush1.msra.mxu0 0.0
  %1104 = vmatprep.subr.mxu0 0.0
  %1105 = vmatpush1.msra.mxu0 0.0
  %1106 = vmatprep.subr.mxu0 0.0
  %1107 = vmatpush1.msra.mxu0 0.0
  %1108 = vmatprep.mubr.f32.mxu0 0.0
  %v1109 = vand.u32 %v1034, 4294901760
  %v1110 = vsub.f32 %v1034, %v1109
  %v1111 = vand.u32 %v1110, 4294901760
  %v1112 = vsub.f32 %v1110, %v1111
  %v1113 = vand.u32 %v1112, 4294901760
  %1114 = vmatmul.mubr.f32.gmra.mrb[0].mxu0 %v1113
  %v1115 = vpop.f32.mrb[0].mxu0
  %v1116 = vadd.f32 %v1030, %v1115
  %v1117 = vpop.f32.mrb[0].mxu0
  %v1118 = vadd.f32 %v1030, %v1117
  %1119 = vdwg.mxu0
  %v1120 = vand.u32 %v1018, 4294901760
  %v1121 = vsub.f32 %v1018, %v1120
  %v1122 = vand.u32 %v1121, 4294901760
  %v1123 = vsub.f32 %v1121, %v1122
  %v1124 = vand.u32 %v1123, 4294901760
  %1125 = vmatprep.subr.mxu0 %v1124
  %v1126 = vand.u32 %v1017, 4294901760
  %v1127 = vsub.f32 %v1017, %v1126
  %v1128 = vand.u32 %v1127, 4294901760
  %v1129 = vsub.f32 %v1127, %v1128
  %v1130 = vand.u32 %v1129, 4294901760
  %1131 = vmatpush1.msra.mxu0 %v1130
  %v1132 = vand.u32 %v1020, 4294901760
  %v1133 = vsub.f32 %v1020, %v1132
  %v1134 = vand.u32 %v1133, 4294901760
  %v1135 = vsub.f32 %v1133, %v1134
  %v1136 = vand.u32 %v1135, 4294901760
  %1137 = vmatprep.subr.mxu0 %v1136
  %v1138 = vand.u32 %v1019, 4294901760
  %v1139 = vsub.f32 %v1019, %v1138
  %v1140 = vand.u32 %v1139, 4294901760
  %v1141 = vsub.f32 %v1139, %v1140
  %v1142 = vand.u32 %v1141, 4294901760
  %1143 = vmatpush1.msra.mxu0 %v1142
  %v1144 = vand.u32 %v1022, 4294901760
  %v1145 = vsub.f32 %v1022, %v1144
  %v1146 = vand.u32 %v1145, 4294901760
  %v1147 = vsub.f32 %v1145, %v1146
  %v1148 = vand.u32 %v1147, 4294901760
  %1149 = vmatprep.subr.mxu0 %v1148
  %v1150 = vand.u32 %v1021, 4294901760
  %v1151 = vsub.f32 %v1021, %v1150
  %v1152 = vand.u32 %v1151, 4294901760
  %v1153 = vsub.f32 %v1151, %v1152
  %v1154 = vand.u32 %v1153, 4294901760
  %1155 = vmatpush1.msra.mxu0 %v1154
  %v1156 = vand.u32 %v1024, 4294901760
  %v1157 = vsub.f32 %v1024, %v1156
  %v1158 = vand.u32 %v1157, 4294901760
  %v1159 = vsub.f32 %v1157, %v1158
  %v1160 = vand.u32 %v1159, 4294901760
  %1161 = vmatprep.subr.mxu0 %v1160
  %v1162 = vand.u32 %v1023, 4294901760
  %v1163 = vsub.f32 %v1023, %v1162
  %v1164 = vand.u32 %v1163, 4294901760
  %v1165 = vsub.f32 %v1163, %v1164
  %v1166 = vand.u32 %v1165, 4294901760
  %1167 = vmatpush1.msra.mxu0 %v1166
  %1168 = vmatprep.subr.mxu0 0.0
  %1169 = vmatpush1.msra.mxu0 0.0
  %1170 = vmatprep.subr.mxu0 0.0
  %1171 = vmatpush1.msra.mxu0 0.0
  %1172 = vmatprep.subr.mxu0 0.0
  %1173 = vmatpush1.msra.mxu0 0.0
  %1174 = vmatprep.subr.mxu0 0.0
  %1175 = vmatpush1.msra.mxu0 0.0
  %1176 = vmatprep.subr.mxu0 0.0
  %1177 = vmatpush1.msra.mxu0 0.0
  %1178 = vmatprep.subr.mxu0 0.0
  %1179 = vmatpush1.msra.mxu0 0.0
  %1180 = vmatprep.subr.mxu0 0.0
  %1181 = vmatpush1.msra.mxu0 0.0
  %1182 = vmatprep.subr.mxu0 0.0
  %1183 = vmatpush1.msra.mxu0 0.0
  %1184 = vmatprep.subr.mxu0 0.0
  %1185 = vmatpush1.msra.mxu0 0.0
  %1186 = vmatprep.subr.mxu0 0.0
  %1187 = vmatpush1.msra.mxu0 0.0
  %1188 = vmatprep.subr.mxu0 0.0
  %1189 = vmatpush1.msra.mxu0 0.0
  %1190 = vmatprep.subr.mxu0 0.0
  %1191 = vmatpush1.msra.mxu0 0.0
  %1192 = vmatprep.subr.mxu0 0.0
  %1193 = vmatpush1.msra.mxu0 0.0
  %1194 = vmatprep.subr.mxu0 0.0
  %1195 = vmatpush1.msra.mxu0 0.0
  %1196 = vmatprep.subr.mxu0 0.0
  %1197 = vmatpush1.msra.mxu0 0.0
  %1198 = vmatprep.subr.mxu0 0.0
  %1199 = vmatpush1.msra.mxu0 0.0
  %1200 = vmatprep.subr.mxu0 0.0
  %1201 = vmatpush1.msra.mxu0 0.0
  %1202 = vmatprep.subr.mxu0 0.0
  %1203 = vmatpush1.msra.mxu0 0.0
  %1204 = vmatprep.subr.mxu0 0.0
  %1205 = vmatpush1.msra.mxu0 0.0
  %1206 = vmatprep.subr.mxu0 0.0
  %1207 = vmatpush1.msra.mxu0 0.0
  %1208 = vmatprep.subr.mxu0 0.0
  %1209 = vmatpush1.msra.mxu0 0.0
  %1210 = vmatprep.subr.mxu0 0.0
  %1211 = vmatpush1.msra.mxu0 0.0
  %1212 = vmatprep.subr.mxu0 0.0
  %1213 = vmatpush1.msra.mxu0 0.0
  %1214 = vmatprep.subr.mxu0 0.0
  %1215 = vmatpush1.msra.mxu0 0.0
  %1216 = vmatprep.subr.mxu0 0.0
  %1217 = vmatpush1.msra.mxu0 0.0
  %1218 = vmatprep.subr.mxu0 0.0
  %1219 = vmatpush1.msra.mxu0 0.0
  %1220 = vmatprep.subr.mxu0 0.0
  %1221 = vmatpush1.msra.mxu0 0.0
  %1222 = vmatprep.subr.mxu0 0.0
  %1223 = vmatpush1.msra.mxu0 0.0
  %1224 = vmatprep.mubr.f32.mxu0 0.0
  %v1225 = vand.u32 %v1034, 4294901760
  %1226 = vmatmul.mubr.f32.gmra.mrb[0].mxu0 %v1225
  %v1227 = vpop.f32.mrb[0].mxu0
  %v1228 = vadd.f32 %v1116, %v1227
  %v1229 = vpop.f32.mrb[0].mxu0
  %v1230 = vadd.f32 %v1118, %v1229
  %1231 = vdwg.mxu0
  %v1232 = vand.u32 %v1018, 4294901760
  %v1233 = vsub.f32 %v1018, %v1232
  %1234 = vmatprep.subr.mxu0 %v1233
  %v1235 = vand.u32 %v1017, 4294901760
  %v1236 = vsub.f32 %v1017, %v1235
  %1237 = vmatpush1.msra.mxu0 %v1236
  %v1238 = vand.u32 %v1020, 4294901760
  %v1239 = vsub.f32 %v1020, %v1238
  %1240 = vmatprep.subr.mxu0 %v1239
  %v1241 = vand.u32 %v1019, 4294901760
  %v1242 = vsub.f32 %v1019, %v1241
  %1243 = vmatpush1.msra.mxu0 %v1242
  %v1244 = vand.u32 %v1022, 4294901760
  %v1245 = vsub.f32 %v1022, %v1244
  %1246 = vmatprep.subr.mxu0 %v1245
  %v1247 = vand.u32 %v1021, 4294901760
  %v1248 = vsub.f32 %v1021, %v1247
  %1249 = vmatpush1.msra.mxu0 %v1248
  %v1250 = vand.u32 %v1024, 4294901760
  %v1251 = vsub.f32 %v1024, %v1250
  %1252 = vmatprep.subr.mxu0 %v1251
  %v1253 = vand.u32 %v1023, 4294901760
  %v1254 = vsub.f32 %v1023, %v1253
  %1255 = vmatpush1.msra.mxu0 %v1254
  %1256 = vmatprep.subr.mxu0 0.0
  %1257 = vmatpush1.msra.mxu0 0.0
  %1258 = vmatprep.subr.mxu0 0.0
  %1259 = vmatpush1.msra.mxu0 0.0
  %1260 = vmatprep.subr.mxu0 0.0
  %1261 = vmatpush1.msra.mxu0 0.0
  %1262 = vmatprep.subr.mxu0 0.0
  %1263 = vmatpush1.msra.mxu0 0.0
  %1264 = vmatprep.subr.mxu0 0.0
  %1265 = vmatpush1.msra.mxu0 0.0
  %1266 = vmatprep.subr.mxu0 0.0
  %1267 = vmatpush1.msra.mxu0 0.0
  %1268 = vmatprep.subr.mxu0 0.0
  %1269 = vmatpush1.msra.mxu0 0.0
  %1270 = vmatprep.subr.mxu0 0.0
  %1271 = vmatpush1.msra.mxu0 0.0
  %1272 = vmatprep.subr.mxu0 0.0
  %1273 = vmatpush1.msra.mxu0 0.0
  %1274 = vmatprep.subr.mxu0 0.0
  %1275 = vmatpush1.msra.mxu0 0.0
  %1276 = vmatprep.subr.mxu0 0.0
  %1277 = vmatpush1.msra.mxu0 0.0
  %1278 = vmatprep.subr.mxu0 0.0
  %1279 = vmatpush1.msra.mxu0 0.0
  %1280 = vmatprep.subr.mxu0 0.0
  %1281 = vmatpush1.msra.mxu0 0.0
  %1282 = vmatprep.subr.mxu0 0.0
  %1283 = vmatpush1.msra.mxu0 0.0
  %1284 = vmatprep.subr.mxu0 0.0
  %1285 = vmatpush1.msra.mxu0 0.0
  %1286 = vmatprep.subr.mxu0 0.0
  %1287 = vmatpush1.msra.mxu0 0.0
  %1288 = vmatprep.subr.mxu0 0.0
  %1289 = vmatpush1.msra.mxu0 0.0
  %1290 = vmatprep.subr.mxu0 0.0
  %1291 = vmatpush1.msra.mxu0 0.0
  %1292 = vmatprep.subr.mxu0 0.0
  %1293 = vmatpush1.msra.mxu0 0.0
  %1294 = vmatprep.subr.mxu0 0.0
  %1295 = vmatpush1.msra.mxu0 0.0
  %1296 = vmatprep.subr.mxu0 0.0
  %1297 = vmatpush1.msra.mxu0 0.0
  %1298 = vmatprep.subr.mxu0 0.0
  %1299 = vmatpush1.msra.mxu0 0.0
  %1300 = vmatprep.subr.mxu0 0.0
  %1301 = vmatpush1.msra.mxu0 0.0
  %1302 = vmatprep.subr.mxu0 0.0
  %1303 = vmatpush1.msra.mxu0 0.0
  %1304 = vmatprep.subr.mxu0 0.0
  %1305 = vmatpush1.msra.mxu0 0.0
  %1306 = vmatprep.subr.mxu0 0.0
  %1307 = vmatpush1.msra.mxu0 0.0
  %1308 = vmatprep.subr.mxu0 0.0
  %1309 = vmatpush1.msra.mxu0 0.0
  %1310 = vmatprep.subr.mxu0 0.0
  %1311 = vmatpush1.msra.mxu0 0.0
  %1312 = vmatprep.mubr.f32.mxu0 0.0
  %v1313 = vand.u32 %v1034, 4294901760
  %v1314 = vsub.f32 %v1034, %v1313
  %1315 = vmatmul.mubr.f32.gmra.mrb[0].mxu0 %v1314
  %v1316 = vpop.f32.mrb[0].mxu0
  %v1317 = vadd.f32 %v1228, %v1316
  %v1318 = vpop.f32.mrb[0].mxu0
  %v1319 = vadd.f32 %v1230, %v1318
  %1320 = vdwg.mxu0
  %v1321 = vand.u32 %v1018, 4294901760
  %1322 = vmatprep.subr.mxu0 %v1321
  %v1323 = vand.u32 %v1017, 4294901760
  %1324 = vmatpush1.msra.mxu0 %v1323
  %v1325 = vand.u32 %v1020, 4294901760
  %1326 = vmatprep.subr.mxu0 %v1325
  %v1327 = vand.u32 %v1019, 4294901760
  %1328 = vmatpush1.msra.mxu0 %v1327
  %v1329 = vand.u32 %v1022, 4294901760
  %1330 = vmatprep.subr.mxu0 %v1329
  %v1331 = vand.u32 %v1021, 4294901760
  %1332 = vmatpush1.msra.mxu0 %v1331
  %v1333 = vand.u32 %v1024, 4294901760
  %1334 = vmatprep.subr.mxu0 %v1333
  %v1335 = vand.u32 %v1023, 4294901760
  %1336 = vmatpush1.msra.mxu0 %v1335
  %1337 = vmatprep.subr.mxu0 0.0
  %1338 = vmatpush1.msra.mxu0 0.0
  %1339 = vmatprep.subr.mxu0 0.0
  %1340 = vmatpush1.msra.mxu0 0.0
  %1341 = vmatprep.subr.mxu0 0.0
  %1342 = vmatpush1.msra.mxu0 0.0
  %1343 = vmatprep.subr.mxu0 0.0
  %1344 = vmatpush1.msra.mxu0 0.0
  %1345 = vmatprep.subr.mxu0 0.0
  %1346 = vmatpush1.msra.mxu0 0.0
  %1347 = vmatprep.subr.mxu0 0.0
  %1348 = vmatpush1.msra.mxu0 0.0
  %1349 = vmatprep.subr.mxu0 0.0
  %1350 = vmatpush1.msra.mxu0 0.0
  %1351 = vmatprep.subr.mxu0 0.0
  %1352 = vmatpush1.msra.mxu0 0.0
  %1353 = vmatprep.subr.mxu0 0.0
  %1354 = vmatpush1.msra.mxu0 0.0
  %1355 = vmatprep.subr.mxu0 0.0
  %1356 = vmatpush1.msra.mxu0 0.0
  %1357 = vmatprep.subr.mxu0 0.0
  %1358 = vmatpush1.msra.mxu0 0.0
  %1359 = vmatprep.subr.mxu0 0.0
  %1360 = vmatpush1.msra.mxu0 0.0
  %1361 = vmatprep.subr.mxu0 0.0
  %1362 = vmatpush1.msra.mxu0 0.0
  %1363 = vmatprep.subr.mxu0 0.0
  %1364 = vmatpush1.msra.mxu0 0.0
  %1365 = vmatprep.subr.mxu0 0.0
  %1366 = vmatpush1.msra.mxu0 0.0
  %1367 = vmatprep.subr.mxu0 0.0
  %1368 = vmatpush1.msra.mxu0 0.0
  %1369 = vmatprep.subr.mxu0 0.0
  %1370 = vmatpush1.msra.mxu0 0.0
  %1371 = vmatprep.subr.mxu0 0.0
  %1372 = vmatpush1.msra.mxu0 0.0
  %1373 = vmatprep.subr.mxu0 0.0
  %1374 = vmatpush1.msra.mxu0 0.0
  %1375 = vmatprep.subr.mxu0 0.0
  %1376 = vmatpush1.msra.mxu0 0.0
  %1377 = vmatprep.subr.mxu0 0.0
  %1378 = vmatpush1.msra.mxu0 0.0
  %1379 = vmatprep.subr.mxu0 0.0
  %1380 = vmatpush1.msra.mxu0 0.0
  %1381 = vmatprep.subr.mxu0 0.0
  %1382 = vmatpush1.msra.mxu0 0.0
  %1383 = vmatprep.subr.mxu0 0.0
  %1384 = vmatpush1.msra.mxu0 0.0
  %1385 = vmatprep.subr.mxu0 0.0
  %1386 = vmatpush1.msra.mxu0 0.0
  %1387 = vmatprep.subr.mxu0 0.0
  %1388 = vmatpush1.msra.mxu0 0.0
  %1389 = vmatprep.subr.mxu0 0.0
  %1390 = vmatpush1.msra.mxu0 0.0
  %1391 = vmatprep.subr.mxu0 0.0
  %1392 = vmatpush1.msra.mxu0 0.0
  %1393 = vmatprep.mubr.f32.mxu0 0.0
  %v1394 = vand.u32 %v1034, 4294901760
  %v1395 = vsub.f32 %v1034, %v1394
  %v1396 = vand.u32 %v1395, 4294901760
  %1397 = vmatmul.mubr.f32.gmra.mrb[0].mxu0 %v1396
  %v1398 = vpop.f32.mrb[0].mxu0
  %v1399 = vadd.f32 %v1317, %v1398
  %v1400 = vpop.f32.mrb[0].mxu0
  %v1401 = vadd.f32 %v1319, %v1400
  %1402 = vdwg.mxu0
  %v1403 = vand.u32 %v1018, 4294901760
  %v1404 = vsub.f32 %v1018, %v1403
  %v1405 = vand.u32 %v1404, 4294901760
  %1406 = vmatprep.subr.mxu0 %v1405
  %v1407 = vand.u32 %v1017, 4294901760
  %v1408 = vsub.f32 %v1017, %v1407
  %v1409 = vand.u32 %v1408, 4294901760
  %1410 = vmatpush1.msra.mxu0 %v1409
  %v1411 = vand.u32 %v1020, 4294901760
  %v1412 = vsub.f32 %v1020, %v1411
  %v1413 = vand.u32 %v1412, 4294901760
  %1414 = vmatprep.subr.mxu0 %v1413
  %v1415 = vand.u32 %v1019, 4294901760
  %v1416 = vsub.f32 %v1019, %v1415
  %v1417 = vand.u32 %v1416, 4294901760
  %1418 = vmatpush1.msra.mxu0 %v1417
  %v1419 = vand.u32 %v1022, 4294901760
  %v1420 = vsub.f32 %v1022, %v1419
  %v1421 = vand.u32 %v1420, 4294901760
  %1422 = vmatprep.subr.mxu0 %v1421
  %v1423 = vand.u32 %v1021, 4294901760
  %v1424 = vsub.f32 %v1021, %v1423
  %v1425 = vand.u32 %v1424, 4294901760
  %1426 = vmatpush1.msra.mxu0 %v1425
  %v1427 = vand.u32 %v1024, 4294901760
  %v1428 = vsub.f32 %v1024, %v1427
  %v1429 = vand.u32 %v1428, 4294901760
  %1430 = vmatprep.subr.mxu0 %v1429
  %v1431 = vand.u32 %v1023, 4294901760
  %v1432 = vsub.f32 %v1023, %v1431
  %v1433 = vand.u32 %v1432, 4294901760
  %1434 = vmatpush1.msra.mxu0 %v1433
  %1435 = vmatprep.subr.mxu0 0.0
  %1436 = vmatpush1.msra.mxu0 0.0
  %1437 = vmatprep.subr.mxu0 0.0
  %1438 = vmatpush1.msra.mxu0 0.0
  %1439 = vmatprep.subr.mxu0 0.0
  %1440 = vmatpush1.msra.mxu0 0.0
  %1441 = vmatprep.subr.mxu0 0.0
  %1442 = vmatpush1.msra.mxu0 0.0
  %1443 = vmatprep.subr.mxu0 0.0
  %1444 = vmatpush1.msra.mxu0 0.0
  %1445 = vmatprep.subr.mxu0 0.0
  %1446 = vmatpush1.msra.mxu0 0.0
  %1447 = vmatprep.subr.mxu0 0.0
  %1448 = vmatpush1.msra.mxu0 0.0
  %1449 = vmatprep.subr.mxu0 0.0
  %1450 = vmatpush1.msra.mxu0 0.0
  %1451 = vmatprep.subr.mxu0 0.0
  %1452 = vmatpush1.msra.mxu0 0.0
  %1453 = vmatprep.subr.mxu0 0.0
  %1454 = vmatpush1.msra.mxu0 0.0
  %1455 = vmatprep.subr.mxu0 0.0
  %1456 = vmatpush1.msra.mxu0 0.0
  %1457 = vmatprep.subr.mxu0 0.0
  %1458 = vmatpush1.msra.mxu0 0.0
  %1459 = vmatprep.subr.mxu0 0.0
  %1460 = vmatpush1.msra.mxu0 0.0
  %1461 = vmatprep.subr.mxu0 0.0
  %1462 = vmatpush1.msra.mxu0 0.0
  %1463 = vmatprep.subr.mxu0 0.0
  %1464 = vmatpush1.msra.mxu0 0.0
  %1465 = vmatprep.subr.mxu0 0.0
  %1466 = vmatpush1.msra.mxu0 0.0
  %1467 = vmatprep.subr.mxu0 0.0
  %1468 = vmatpush1.msra.mxu0 0.0
  %1469 = vmatprep.subr.mxu0 0.0
  %1470 = vmatpush1.msra.mxu0 0.0
  %1471 = vmatprep.subr.mxu0 0.0
  %1472 = vmatpush1.msra.mxu0 0.0
  %1473 = vmatprep.subr.mxu0 0.0
  %1474 = vmatpush1.msra.mxu0 0.0
  %1475 = vmatprep.subr.mxu0 0.0
  %1476 = vmatpush1.msra.mxu0 0.0
  %1477 = vmatprep.subr.mxu0 0.0
  %1478 = vmatpush1.msra.mxu0 0.0
  %1479 = vmatprep.subr.mxu0 0.0
  %1480 = vmatpush1.msra.mxu0 0.0
  %1481 = vmatprep.subr.mxu0 0.0
  %1482 = vmatpush1.msra.mxu0 0.0
  %1483 = vmatprep.subr.mxu0 0.0
  %1484 = vmatpush1.msra.mxu0 0.0
  %1485 = vmatprep.subr.mxu0 0.0
  %1486 = vmatpush1.msra.mxu0 0.0
  %1487 = vmatprep.subr.mxu0 0.0
  %1488 = vmatpush1.msra.mxu0 0.0
  %1489 = vmatprep.subr.mxu0 0.0
  %1490 = vmatpush1.msra.mxu0 0.0
  %1491 = vmatprep.mubr.f32.mxu0 0.0
  %v1492 = vand.u32 %v1034, 4294901760
  %1493 = vmatmul.mubr.f32.gmra.mrb[0].mxu0 %v1492
  %v1494 = vpop.f32.mrb[0].mxu0
  %v1495 = vadd.f32 %v1399, %v1494
  %v1496 = vpop.f32.mrb[0].mxu0
  %v1497 = vadd.f32 %v1401, %v1496
  %1498 = vdwg.mxu0
  %v1499 = vand.u32 %v1018, 4294901760
  %1500 = vmatprep.subr.mxu0 %v1499
  %v1501 = vand.u32 %v1017, 4294901760
  %1502 = vmatpush1.msra.mxu0 %v1501
  %v1503 = vand.u32 %v1020, 4294901760
  %1504 = vmatprep.subr.mxu0 %v1503
  %v1505 = vand.u32 %v1019, 4294901760
  %1506 = vmatpush1.msra.mxu0 %v1505
  %v1507 = vand.u32 %v1022, 4294901760
  %1508 = vmatprep.subr.mxu0 %v1507
  %v1509 = vand.u32 %v1021, 4294901760
  %1510 = vmatpush1.msra.mxu0 %v1509
  %v1511 = vand.u32 %v1024, 4294901760
  %1512 = vmatprep.subr.mxu0 %v1511
  %v1513 = vand.u32 %v1023, 4294901760
  %1514 = vmatpush1.msra.mxu0 %v1513
  %1515 = vmatprep.subr.mxu0 0.0
  %1516 = vmatpush1.msra.mxu0 0.0
  %1517 = vmatprep.subr.mxu0 0.0
  %1518 = vmatpush1.msra.mxu0 0.0
  %1519 = vmatprep.subr.mxu0 0.0
  %1520 = vmatpush1.msra.mxu0 0.0
  %1521 = vmatprep.subr.mxu0 0.0
  %1522 = vmatpush1.msra.mxu0 0.0
  %1523 = vmatprep.subr.mxu0 0.0
  %1524 = vmatpush1.msra.mxu0 0.0
  %1525 = vmatprep.subr.mxu0 0.0
  %1526 = vmatpush1.msra.mxu0 0.0
  %1527 = vmatprep.subr.mxu0 0.0
  %1528 = vmatpush1.msra.mxu0 0.0
  %1529 = vmatprep.subr.mxu0 0.0
  %1530 = vmatpush1.msra.mxu0 0.0
  %1531 = vmatprep.subr.mxu0 0.0
  %1532 = vmatpush1.msra.mxu0 0.0
  %1533 = vmatprep.subr.mxu0 0.0
  %1534 = vmatpush1.msra.mxu0 0.0
  %1535 = vmatprep.subr.mxu0 0.0
  %1536 = vmatpush1.msra.mxu0 0.0
  %1537 = vmatprep.subr.mxu0 0.0
  %1538 = vmatpush1.msra.mxu0 0.0
  %1539 = vmatprep.subr.mxu0 0.0
  %1540 = vmatpush1.msra.mxu0 0.0
  %1541 = vmatprep.subr.mxu0 0.0
  %1542 = vmatpush1.msra.mxu0 0.0
  %1543 = vmatprep.subr.mxu0 0.0
  %1544 = vmatpush1.msra.mxu0 0.0
  %1545 = vmatprep.subr.mxu0 0.0
  %1546 = vmatpush1.msra.mxu0 0.0
  %1547 = vmatprep.subr.mxu0 0.0
  %1548 = vmatpush1.msra.mxu0 0.0
  %1549 = vmatprep.subr.mxu0 0.0
  %1550 = vmatpush1.msra.mxu0 0.0
  %1551 = vmatprep.subr.mxu0 0.0
  %1552 = vmatpush1.msra.mxu0 0.0
  %1553 = vmatprep.subr.mxu0 0.0
  %1554 = vmatpush1.msra.mxu0 0.0
  %1555 = vmatprep.subr.mxu0 0.0
  %1556 = vmatpush1.msra.mxu0 0.0
  %1557 = vmatprep.subr.mxu0 0.0
  %1558 = vmatpush1.msra.mxu0 0.0
  %1559 = vmatprep.subr.mxu0 0.0
  %1560 = vmatpush1.msra.mxu0 0.0
  %1561 = vmatprep.subr.mxu0 0.0
  %1562 = vmatpush1.msra.mxu0 0.0
  %1563 = vmatprep.subr.mxu0 0.0
  %1564 = vmatpush1.msra.mxu0 0.0
  %1565 = vmatprep.subr.mxu0 0.0
  %1566 = vmatpush1.msra.mxu0 0.0
  %1567 = vmatprep.subr.mxu0 0.0
  %1568 = vmatpush1.msra.mxu0 0.0
  %1569 = vmatprep.subr.mxu0 0.0
  %1570 = vmatpush1.msra.mxu0 0.0
  %1571 = vmatprep.mubr.f32.mxu0 0.0
  %v1572 = vand.u32 %v1034, 4294901760
  %1573 = vmatmul.mubr.f32.gmra.mrb[0].mxu0 %v1572
  %v1574 = vpop.f32.mrb[0].mxu0
  %v1575 = vadd.f32 %v1495, %v1574
  %v1576 = vpop.f32.mrb[0].mxu0
  %v1577 = vadd.f32 %v1497, %v1576
  %1578 = vdwg.mxu0
  %v1579 = vrot.slane %v1575, 4
  %v1580 = vmax.f32 %v1575, %v1579
  %v1581 = vrot.slane %v1580, 2
  %v1582 = vmax.f32 %v1580, %v1581
  %v1583 = vrot.slane %v1582, 1
  %v1584 = vmax.f32 %v1582, %v1583
  %v1585 = vrot.slane %v1577, 4
  %v1586 = vmax.f32 %v1577, %v1585
  %v1587 = vrot.slane %v1586, 2
  %v1588 = vmax.f32 %v1586, %v1587
  %v1589 = vrot.slane %v1588, 1
  %v1590 = vmax.f32 %v1588, %v1589
  %v1591 = vsub.f32 %v1575, %v1584
  %v1592 = vsub.f32 %v1577, %v1590
  %v1593 = vmul.f32 %v1591, 1.442695
  %v1594 = vpow.pop %v1593
  %v1595 = vmul.f32 %v1592, 1.442695
  %v1596 = vpow.pop %v1595
  %v1597 = vrot.slane %v1594, 4
  %v1598 = vadd.f32 %v1594, %v1597
  %v1599 = vrot.slane %v1598, 2
  %v1600 = vadd.f32 %v1598, %v1599
  %v1601 = vrot.slane %v1600, 1
  %v1602 = vadd.f32 %v1600, %v1601
  %v1603 = vrot.slane %v1596, 4
  %v1604 = vadd.f32 %v1596, %v1603
  %v1605 = vrot.slane %v1604, 2
  %v1606 = vadd.f32 %v1604, %v1605
  %v1607 = vrot.slane %v1606, 1
  %v1608 = vadd.f32 %v1606, %v1607
  %v1609 = vrcp.pop %v1602
  %v1610 = vmul.f32 %v1594, %v1609
  %v1611 = vrcp.pop %v1608
  %v1612 = vmul.f32 %v1596, %v1611
  %1613 = vst [vmem:[%s7] sm:$0xff] %v1575
  %1614 = vst [vmem:[%s7 + $0x8] sm:$0xff] %v1577
  %1615 = vst [vmem:[%s7 + $0x10] sm:$0xff] %v1610
  %1616 = vst [vmem:[%s7 + $0x18] sm:$0xff] %v1612
  // Predicated region
  $region30: #{moe_router_forward.1} parent=0 // pred_check
    _
  $region31: #{moe_router_forward.1} parent=0 // pred_check_branch
    %1618 = sbr.rel (0) target = $region33
  $region32: #{moe_router_forward.1} parent=0 // pred_region
    _
  $region33: #{moe_router_forward.1} parent=0 // pred_fallthru
    _
  // Predicated region
  $region34: #{moe_router_forward.1} parent=0 // pred_check
    _
  $region35: #{moe_router_forward.1} parent=0 // pred_check_branch
    %1620 = sbr.rel (0) target = $region37
  $region36: #{moe_router_forward.1} parent=0 // pred_region
    _
  $region37: #{moe_router_forward.1} parent=0 // pred_fallthru
    _

</llo_original>
